<compile_context>
chip_gen: v5e
topology: v5e:2x2
jax: 0.10.0
libtpu: 0.0.40
codegen_flags: <defaults>
</compile_context>

<pallas_src>
import functools

import jax
import jax.numpy as jnp
from jax.experimental import pallas as pl
from jax.experimental.pallas import tpu as pltpu


def _round_up(x, m):
    return ((x + m - 1) // m) * m


def _affinity_sigmoid_kernel(x1_ref, x2_ref,
                             w1a_ref, w1b_ref, b1_ref,
                             w2_ref, b2_ref,
                             w3_ref, b3_ref,
                             out_ref):
    mm_dtype = w1a_ref.dtype
    x1 = x1_ref[...].astype(mm_dtype)
    x2 = x2_ref[...].astype(mm_dtype)

    # fc1 on the concatenated features, expressed as split-K partial matmuls:
    #   cat([x1, x2], dim=1) @ W1  ==  x1 @ W1[:dim1] + x2 @ W1[dim1:]
    z1 = (jnp.dot(x1, w1a_ref[...], preferred_element_type=jnp.float32)
          + jnp.dot(x2, w1b_ref[...], preferred_element_type=jnp.float32)
          + b1_ref[...])
    # Sigmoid via tanh: single EUP transcendental + cheap VALU scale/add,
    # mathematically identical to 1/(1+exp(-z1)) and avoids a VALU divide.
    h1 = 0.5 * (jnp.tanh(0.5 * z1) + 1.0)

    z2 = jnp.dot(h1.astype(mm_dtype), w2_ref[...],
                 preferred_element_type=jnp.float32) + b2_ref[...]
    h2 = jnp.maximum(z2, 0.0)                              # ReLU (f32)

    out = jnp.dot(h2.astype(mm_dtype), w3_ref[...],
                  preferred_element_type=jnp.float32) + b3_ref[...]
    out_ref[...] = out.astype(out_ref.dtype)


@functools.partial(jax.jit, static_argnames=("block_b", "matmul_dtype"))
def affinity_merge_forward(x1, x2, params, block_b=512, matmul_dtype=jnp.float32):
    """params: w1 [dim1+dim2, 8*dim3], w2 [8*dim3, 2*dim3], w3 [2*dim3, dim4]
    (already transposed to [in, out]) and biases b1/b2/b3 with shape [1, out]."""
    B, dim1 = x1.shape
    B2, dim2 = x2.shape
    assert B2 == B
    w1, b1 = params["w1"], params["b1"]
    w2, b2 = params["w2"], params["b2"]
    w3, b3 = params["w3"], params["b3"]
    assert w1.shape[0] == dim1 + dim2
    h1_dim = w1.shape[1]
    h2_dim = w2.shape[1]
    dim4 = w3.shape[1]

    # --- batch tiling: big tiles, cdiv grid, ragged last tile handled by Pallas
    # (no wrapper-side pad => no extra HBM round trip of the inputs).
    block_b = _round_up(max(block_b, 8), 8)
    if B >= 16:
        # Keep >= 2 grid steps so dimension_semantics=("parallel",) can shard
        # the grid across both v7x TensorCores; negligible cost on 1-TC chips.
        block_b = min(block_b, _round_up(pl.cdiv(B, 2), 8))
    else:
        block_b = min(block_b, _round_up(B, 8))
    grid_b = pl.cdiv(B, block_b)

    # --- weight preprocessing: split fc1 over K (removes the lane-axis concat)
    w1a = w1[:dim1].astype(matmul_dtype)
    w1b = w1[dim1:].astype(matmul_dtype)
    w2c = w2.astype(matmul_dtype)
    w3c = w3.astype(matmul_dtype)
    b1f = b1.astype(jnp.float32)
    b2f = b2.astype(jnp.float32)
    b3f = b3.astype(jnp.float32)

    # --- VMEM budget, re-derived from shapes so scaling block_b / dims is safe.
    # Binding term: double-buffered activation tiles + resident weights +
    # in-kernel intermediates; clamp below v7x's 64 MiB physical VMEM.
    w_bytes = sum(int(a.size) * a.dtype.itemsize
                  for a in (w1a, w1b, b1f, w2c, b2f, w3c, b3f))
    io_bytes = 2 * block_b * (dim1 + dim2 + dim4) * 4          # 2x-buffered I/O
    inter_bytes = 3 * block_b * (h1_dim + h2_dim + dim4) * 4   # temps + slack
    vmem_limit = int(min(max(2 * w_bytes + io_bytes + inter_bytes + (4 << 20),
                             16 << 20),
                         48 << 20))

    def full_spec(shape):
        # whole weight / bias resident in VMEM, constant across all grid steps
        return pl.BlockSpec(shape, lambda i: (0, 0))

    # TODO(synk): if the producer of x1/x2 can emit one pre-concatenated
    # [B, dim1+dim2] (ideally bf16) array, feed a single x ref and one K
    # matmul for fc1; do NOT concatenate here (extra HBM round trip).
    out = pl.pallas_call(
        _affinity_sigmoid_kernel,
        # Unpadded, lane-narrow output: block last dim == full array dim is
        # legal; HBM writeback is 16x smaller than the old 128-padded buffer.
        out_shape=jax.ShapeDtypeStruct((B, dim4), jnp.float32),
        grid_spec=pltpu.PrefetchScalarGridSpec(
            num_scalar_prefetch=0,
            grid=(grid_b,),
            in_specs=[
                pl.BlockSpec((block_b, dim1), lambda i: (i, 0)),   # x1 tile
                pl.BlockSpec((block_b, dim2), lambda i: (i, 0)),   # x2 tile
                full_spec(w1a.shape), full_spec(w1b.shape), full_spec(b1f.shape),
                full_spec(w2c.shape), full_spec(b2f.shape),
                full_spec(w3c.shape), full_spec(b3f.shape),
            ],
            out_specs=pl.BlockSpec((block_b, dim4), lambda i: (i, 0)),
        ),
        compiler_params=pltpu.CompilerParams(
            dimension_semantics=("parallel",),
            vmem_limit_bytes=vmem_limit),
    )(x1, x2, w1a, w1b, b1f, w2c, b2f, w3c, b3f)
    return out


def init_params(key, dim1, dim2, dim3, dim4):
    """Mirror the PyTorch module's init; weights returned transposed to [in, out].

    fc1, fc2: xavier-normal weights (as in __init__); fc3: torch-default
    uniform(+-1/sqrt(fan_in)); all biases: uniform(+-1/sqrt(fan_in))."""
    dims = [(dim1 + dim2, dim3 * 8),
            (dim3 * 8, dim3 * 2),
            (dim3 * 2, dim4)]
    params = {}
    for idx, (fan_in, fan_out) in enumerate(dims, start=1):
        key, kw, kb = jax.random.split(key, 3)
        if idx <= 2:  # xavier normal
            std = (2.0 / (fan_in + fan_out)) ** 0.5
            w = std * jax.random.normal(kw, (fan_in, fan_out), jnp.float32)
        else:        # torch default kaiming-uniform-ish
            bound = 1.0 / (fan_in ** 0.5)
            w = jax.random.uniform(kw, (fan_in, fan_out), jnp.float32,
                                   minval=-bound, maxval=bound)
        bbound = 1.0 / (fan_in ** 0.5)
        b = jax.random.uniform(kb, (1, fan_out), jnp.float32,
                               minval=-bbound, maxval=bbound)
        params[f"w{idx}"] = w
        params[f"b{idx}"] = b
    return params


def _reference(x1, x2, params):
    """Pure-JAX reference matching the PyTorch f32 forward (highest precision)."""
    def lin(h, w, b):
        return jnp.dot(h, w, precision=jax.lax.Precision.HIGHEST,
                       preferred_element_type=jnp.float32) + b
    x = jnp.concatenate([x1, x2], axis=1)
    h1 = jax.nn.sigmoid(lin(x, params["w1"], params["b1"]))
    h2 = jnp.maximum(lin(h1, params["w2"], params["b2"]), 0.0)
    return lin(h2, params["w3"], params["b3"])


if __name__ == "__main__":
    # dim1=dim2=32, dim3=16, dim4=8 -> feature widths: 64 -> 128 -> 32 -> 8
    dim1, dim2, dim3, dim4 = 32, 32, 16, 8
    # B deliberately NOT a multiple of the batch tile: exercises the ragged
    # last grid tile (no wrapper-side pad) and gives a 2-step grid so both
    # v7x TensorCores get work.
    B = 500

    key = jax.random.PRNGKey(0)
    kx1, kx2, kp = jax.random.split(key, 3)
    x1 = jax.random.normal(kx1, (B, dim1), jnp.float32)
    x2 = jax.random.normal(kx2, (B, dim2), jnp.float32)
    params = init_params(kp, dim1, dim2, dim3, dim4)

    out = affinity_merge_forward(x1, x2, params)
    out = jax.block_until_ready(out)
    assert out.shape == (B, dim4)

    # Check vs the PyTorch-equivalent f32 reference.  Tolerance covers the
    # (worst-case) possibility of reduced-precision MXU passes in-kernel.
    ref = _reference(x1, x2, params)
    max_err = float(jnp.max(jnp.abs(out - ref)))
    assert jnp.allclose(out, ref, atol=2e-2, rtol=2e-2), (
        f"mismatch vs f32 reference, max abs err = {max_err}")

    print("KERNEL_OK")
</pallas_src>

<mosaic_0001>
module attributes {stable_mosaic.version = 11 : i64} {
  func.func @_affinity_sigmoid_kernel(%arg0: i32, %arg1: memref<256x32xf32, #tpu.memory_space<vmem>>, %arg2: memref<256x32xf32, #tpu.memory_space<vmem>>, %arg3: memref<32x128xf32, #tpu.memory_space<vmem>>, %arg4: memref<32x128xf32, #tpu.memory_space<vmem>>, %arg5: memref<1x128xf32, #tpu.memory_space<vmem>>, %arg6: memref<128x32xf32, #tpu.memory_space<vmem>>, %arg7: memref<1x32xf32, #tpu.memory_space<vmem>>, %arg8: memref<32x8xf32, #tpu.memory_space<vmem>>, %arg9: memref<1x8xf32, #tpu.memory_space<vmem>>, %arg10: memref<256x8xf32, #tpu.memory_space<vmem>>) attributes {dimension_semantics = [#tpu.dimension_semantics<parallel>], iteration_bounds = array<i64: 2>, scalar_prefetch = 0 : i64, scratch_operands = 0 : i64, tpu.core_type = #tpu.core_type<tc>, window_params = [{transform_indices = @transform_0, window_bounds = array<i64: 256, 32>}, {transform_indices = @transform_1, window_bounds = array<i64: 256, 32>}, {pipeline_mode = #tpu.pipeline_mode<synchronous>, transform_indices = @transform_2, window_bounds = array<i64: 32, 128>}, {pipeline_mode = #tpu.pipeline_mode<synchronous>, transform_indices = @transform_3, window_bounds = array<i64: 32, 128>}, {pipeline_mode = #tpu.pipeline_mode<synchronous>, transform_indices = @transform_4, window_bounds = array<i64: 1, 128>}, {pipeline_mode = #tpu.pipeline_mode<synchronous>, transform_indices = @transform_5, window_bounds = array<i64: 128, 32>}, {pipeline_mode = #tpu.pipeline_mode<synchronous>, transform_indices = @transform_6, window_bounds = array<i64: 1, 32>}, {pipeline_mode = #tpu.pipeline_mode<synchronous>, transform_indices = @transform_7, window_bounds = array<i64: 32, 8>}, {pipeline_mode = #tpu.pipeline_mode<synchronous>, transform_indices = @transform_8, window_bounds = array<i64: 1, 8>}, {transform_indices = @transform_9, window_bounds = array<i64: 256, 8>}]} {
    %c0 = arith.constant 0 : index
    %c0_0 = arith.constant 0 : index
    %0 = vector.load %arg1[%c0, %c0_0] : memref<256x32xf32, #tpu.memory_space<vmem>>, vector<256x32xf32>
    %c0_1 = arith.constant 0 : index
    %c0_2 = arith.constant 0 : index
    %1 = vector.load %arg2[%c0_1, %c0_2] : memref<256x32xf32, #tpu.memory_space<vmem>>, vector<256x32xf32>
    %c0_3 = arith.constant 0 : index
    %c0_4 = arith.constant 0 : index
    %2 = vector.load %arg3[%c0_3, %c0_4] : memref<32x128xf32, #tpu.memory_space<vmem>>, vector<32x128xf32>
    %cst = arith.constant dense<0.000000e+00> : vector<256x128xf32>
    %3 = tpu.matmul %0, %2, %cst {dimension_numbers = #tpu.dot_dimension_numbers<[1], [0], [0], [1], [0, 0, 1, 1], [], []>} : vector<256x32xf32>, vector<32x128xf32>, vector<256x128xf32> -> vector<256x128xf32>
    %c0_5 = arith.constant 0 : index
    %c0_6 = arith.constant 0 : index
    %4 = vector.load %arg4[%c0_5, %c0_6] : memref<32x128xf32, #tpu.memory_space<vmem>>, vector<32x128xf32>
    %cst_7 = arith.constant dense<0.000000e+00> : vector<256x128xf32>
    %5 = tpu.matmul %1, %4, %cst_7 {dimension_numbers = #tpu.dot_dimension_numbers<[1], [0], [0], [1], [0, 0, 1, 1], [], []>} : vector<256x32xf32>, vector<32x128xf32>, vector<256x128xf32> -> vector<256x128xf32>
    %6 = arith.addf %3, %5 : vector<256x128xf32>
    %c0_8 = arith.constant 0 : index
    %c0_9 = arith.constant 0 : index
    %7 = vector.load %arg5[%c0_8, %c0_9] : memref<1x128xf32, #tpu.memory_space<vmem>>, vector<1x128xf32>
    %8 = vector.broadcast %7 : vector<1x128xf32> to vector<256x128xf32>
    %9 = arith.addf %6, %8 : vector<256x128xf32>
    %cst_10 = arith.constant 5.000000e-01 : f32
    %10 = vector.broadcast %cst_10 : f32 to vector<256x128xf32>
    %11 = arith.mulf %10, %9 : vector<256x128xf32>
    %12 = math.tanh %11 : vector<256x128xf32>
    %cst_11 = arith.constant 1.000000e+00 : f32
    %13 = vector.broadcast %cst_11 : f32 to vector<256x128xf32>
    %14 = arith.addf %12, %13 : vector<256x128xf32>
    %cst_12 = arith.constant 5.000000e-01 : f32
    %15 = vector.broadcast %cst_12 : f32 to vector<256x128xf32>
    %16 = arith.mulf %15, %14 : vector<256x128xf32>
    %c0_13 = arith.constant 0 : index
    %c0_14 = arith.constant 0 : index
    %17 = vector.load %arg6[%c0_13, %c0_14] : memref<128x32xf32, #tpu.memory_space<vmem>>, vector<128x32xf32>
    %cst_15 = arith.constant dense<0.000000e+00> : vector<256x32xf32>
    %18 = tpu.matmul %16, %17, %cst_15 {dimension_numbers = #tpu.dot_dimension_numbers<[1], [0], [0], [1], [0, 0, 1, 1], [], []>} : vector<256x128xf32>, vector<128x32xf32>, vector<256x32xf32> -> vector<256x32xf32>
    %c0_16 = arith.constant 0 : index
    %c0_17 = arith.constant 0 : index
    %19 = vector.load %arg7[%c0_16, %c0_17] : memref<1x32xf32, #tpu.memory_space<vmem>>, vector<1x32xf32>
    %20 = vector.broadcast %19 : vector<1x32xf32> to vector<256x32xf32>
    %21 = arith.addf %18, %20 : vector<256x32xf32>
    %cst_18 = arith.constant 0.000000e+00 : f32
    %22 = vector.broadcast %cst_18 : f32 to vector<256x32xf32>
    %23 = arith.maximumf %21, %22 : vector<256x32xf32>
    %c0_19 = arith.constant 0 : index
    %c0_20 = arith.constant 0 : index
    %24 = vector.load %arg8[%c0_19, %c0_20] : memref<32x8xf32, #tpu.memory_space<vmem>>, vector<32x8xf32>
    %cst_21 = arith.constant dense<0.000000e+00> : vector<256x8xf32>
    %25 = tpu.matmul %23, %24, %cst_21 {dimension_numbers = #tpu.dot_dimension_numbers<[1], [0], [0], [1], [0, 0, 1, 1], [], []>} : vector<256x32xf32>, vector<32x8xf32>, vector<256x8xf32> -> vector<256x8xf32>
    %c0_22 = arith.constant 0 : index
    %c0_23 = arith.constant 0 : index
    %26 = vector.load %arg9[%c0_22, %c0_23] : memref<1x8xf32, #tpu.memory_space<vmem>>, vector<1x8xf32>
    %27 = vector.broadcast %26 : vector<1x8xf32> to vector<256x8xf32>
    %28 = arith.addf %25, %27 : vector<256x8xf32>
    %c0_24 = arith.constant 0 : index
    %c0_25 = arith.constant 0 : index
    %29 = vector.load %arg10[%c0_24, %c0_25] : memref<256x8xf32, #tpu.memory_space<vmem>>, vector<256x8xf32>
    tpu.vector_store %arg10[%c0_24, %c0_25], %28 {strides = array<i32>} : memref<256x8xf32, #tpu.memory_space<vmem>>, vector<256x8xf32>,
    return
  }
  func.func @transform_0(%arg0: i32) -> (i32, i32) {
    %c0_i32 = arith.constant 0 : i32
    %c0_i32_0 = arith.constant 0 : i32
    return %arg0, %c0_i32 : i32, i32
  }
  func.func @transform_1(%arg0: i32) -> (i32, i32) {
    %c0_i32 = arith.constant 0 : i32
    %c0_i32_0 = arith.constant 0 : i32
    return %arg0, %c0_i32 : i32, i32
  }
  func.func @transform_2(%arg0: i32) -> (i32, i32) {
    %c0_i32 = arith.constant 0 : i32
    %c0_i32_0 = arith.constant 0 : i32
    %c0_i32_1 = arith.constant 0 : i32
    return %c0_i32, %c0_i32_0 : i32, i32
  }
  func.func @transform_3(%arg0: i32) -> (i32, i32) {
    %c0_i32 = arith.constant 0 : i32
    %c0_i32_0 = arith.constant 0 : i32
    %c0_i32_1 = arith.constant 0 : i32
    return %c0_i32, %c0_i32_0 : i32, i32
  }
  func.func @transform_4(%arg0: i32) -> (i32, i32) {
    %c0_i32 = arith.constant 0 : i32
    %c0_i32_0 = arith.constant 0 : i32
    %c0_i32_1 = arith.constant 0 : i32
    return %c0_i32, %c0_i32_0 : i32, i32
  }
  func.func @transform_5(%arg0: i32) -> (i32, i32) {
    %c0_i32 = arith.constant 0 : i32
    %c0_i32_0 = arith.constant 0 : i32
    %c0_i32_1 = arith.constant 0 : i32
    return %c0_i32, %c0_i32_0 : i32, i32
  }
  func.func @transform_6(%arg0: i32) -> (i32, i32) {
    %c0_i32 = arith.constant 0 : i32
    %c0_i32_0 = arith.constant 0 : i32
    %c0_i32_1 = arith.constant 0 : i32
    return %c0_i32, %c0_i32_0 : i32, i32
  }
  func.func @transform_7(%arg0: i32) -> (i32, i32) {
    %c0_i32 = arith.constant 0 : i32
    %c0_i32_0 = arith.constant 0 : i32
    %c0_i32_1 = arith.constant 0 : i32
    return %c0_i32, %c0_i32_0 : i32, i32
  }
  func.func @transform_8(%arg0: i32) -> (i32, i32) {
    %c0_i32 = arith.constant 0 : i32
    %c0_i32_0 = arith.constant 0 : i32
    %c0_i32_1 = arith.constant 0 : i32
    return %c0_i32, %c0_i32_0 : i32, i32
  }
  func.func @transform_9(%arg0: i32) -> (i32, i32) {
    %c0_i32 = arith.constant 0 : i32
    %c0_i32_0 = arith.constant 0 : i32
    return %arg0, %c0_i32 : i32, i32
  }
}

</mosaic_0001>

<llo_original>
// kernel: affinity_merge_forward.1
$region0: #{affinity_merge_forward.1}
  #allocation0 [shape = 'u32[]', space=smem, size = 0x4, offset = 0x4, fixed_abs, tag = 'smem constant byte address 0x4 - core index']
  #allocation1 [shape = 'u32[72,128]{1,0:T(1,128)}', space=vmem, size = 0x9000, scoped, tag = 'internal scratch']
  %s0 = inlined_call_operand.vmem [shape: f32[500,32], index: 0, kind: input, shape index: {}]
  %s1 = inlined_call_operand.vmem [shape: f32[500,32], index: 1, kind: input, shape index: {}]
  %s2 = inlined_call_operand.vmem [shape: f32[32,128], index: 2, kind: input, shape index: {}]
  %s3 = inlined_call_operand.vmem [shape: f32[32,128], index: 3, kind: input, shape index: {}]
  %s4 = inlined_call_operand.vmem [shape: f32[1,128], index: 4, kind: input, shape index: {}]
  %s5 = inlined_call_operand.vmem [shape: f32[128,32], index: 5, kind: input, shape index: {}]
  %s6 = inlined_call_operand.vmem [shape: f32[1,32], index: 6, kind: input, shape index: {}]
  %s7 = inlined_call_operand.vmem [shape: f32[32,8], index: 7, kind: input, shape index: {}]
  %s8 = inlined_call_operand.vmem [shape: f32[1,8], index: 8, kind: input, shape index: {}]
  %s9 = inlined_call_operand.vmem [shape: f32[500,8], index: 9, kind: output, shape index: {}]
  %s10 = sld [smem:[#allocation0]]
  $region117: #{affinity_merge_forward.1} parent=0
    _
  %s12 = ssub.s32 1, %s10
  %s13 = scalar_select 0, %s12, %s10
  $region1: #{affinity_merge_forward.1} parent=0
    #allocation2 [shape = 'u8[262144]{0}', space=vmem, size = 0x40000, scoped, tag = 'output window, operand 0']
    loop: start=0, step=1, limit=4
    $region2: #{affinity_merge_forward.1} parent=1 // loop_pre_header
      _
    $region3: #{affinity_merge_forward.1} parent=1 // loop_header
      %s15 = sphi 0, %s19
      %p16 = scmp.ge.s32.totalorder %s15, 4
      %s25 = sphi 0, %s27
      %s28 = sphi 0, %s25
      %s29 = sphi 0, %s28
      %s45 = sphi 0, %s29
      %s51 = sphi 0, %s53
      %s54 = sphi 0, %s51
      %s55 = sphi 0, %s54
      %s71 = sphi 0, %s55
      %s75 = sphi 0, %s75
      %s77 = sphi 0, %s75
      %s78 = sphi 0, %s77
      %s92 = sphi 0, %s78
      %s96 = sphi 0, %s96
      %s98 = sphi 0, %s96
      %s99 = sphi 0, %s98
      %s113 = sphi 0, %s99
      %s117 = sphi 0, %s117
      %s119 = sphi 0, %s117
      %s120 = sphi 0, %s119
      %s134 = sphi 0, %s120
      %s138 = sphi 0, %s138
      %s140 = sphi 0, %s138
      %s141 = sphi 0, %s140
      %s155 = sphi 0, %s141
      %s159 = sphi 0, %s159
      %s161 = sphi 0, %s159
      %s162 = sphi 0, %s161
      %s176 = sphi 0, %s162
      %s180 = sphi 0, %s180
      %s182 = sphi 0, %s180
      %s183 = sphi 0, %s182
      %s197 = sphi 0, %s183
      %s201 = sphi 0, %s201
      %s203 = sphi 0, %s201
      %s204 = sphi 0, %s203
      %s218 = sphi 0, %s204
      %s224 = sphi 0, %s226
      %s227 = sphi 0, %s224
      %s228 = sphi 0, %s227
      %s244 = sphi 0, %s228
    $region4: #{affinity_merge_forward.1} parent=1 // loop_header_branch
      %18 = sbr.rel (%p16) target = $region8
    $region5: #{affinity_merge_forward.1} parent=1 // loop_body
      %s20 = ssub.s32 %s15, 1
      %s21 = ssub.s32 %s15, 2
      %s22 = sadd.s32 %s15, 1
      %s23 = ssub.s32 %s15, %s22
      %p24 = scmp.eq.s32.totalorder %s23, 0
      %s26 = sadd.s32 %s25, 1
      %s27 = scalar_select %p24, %s25, %s26
      %p30 = pneg %p24
      %p31 = scmp.eq.s32.totalorder %s15, 1
      %p32 = por %p30, %p31
      %p33 = scmp.ne.s32.totalorder %s25, %s28
      %p34 = scmp.eq.s32.totalorder %s15, 0
      %p35 = por %p33, %p34
      %p36 = scmp.ne.s32.totalorder %s25, %s28
      %p37 = scmp.eq.s32.totalorder %s20, 1
      %p38 = por %p36, %p37
      %p39 = scmp.ne.s32.totalorder %s28, %s29
      %p40 = scmp.eq.s32.totalorder %s20, 0
      %p41 = por %p39, %p40
      %p42 = scmp.ne.s32.totalorder %s28, %s29
      %p43 = scmp.eq.s32.totalorder %s21, 1
      %p44 = por %p42, %p43
      %p46 = scmp.ne.s32.totalorder %s29, %s45
      %p47 = scmp.eq.s32.totalorder %s21, 0
      %p48 = por %p46, %p47
      %s49 = ssub.s32 %s15, %s22
      %p50 = scmp.eq.s32.totalorder %s49, 0
      %s52 = sadd.s32 %s51, 1
      %s53 = scalar_select %p50, %s51, %s52
      %p56 = pneg %p50
      %p57 = scmp.eq.s32.totalorder %s15, 1
      %p58 = por %p56, %p57
      %p59 = scmp.ne.s32.totalorder %s51, %s54
      %p60 = scmp.eq.s32.totalorder %s15, 0
      %p61 = por %p59, %p60
      %p62 = scmp.ne.s32.totalorder %s51, %s54
      %p63 = scmp.eq.s32.totalorder %s20, 1
      %p64 = por %p62, %p63
      %p65 = scmp.ne.s32.totalorder %s54, %s55
      %p66 = scmp.eq.s32.totalorder %s20, 0
      %p67 = por %p65, %p66
      %p68 = scmp.ne.s32.totalorder %s54, %s55
      %p69 = scmp.eq.s32.totalorder %s21, 1
      %p70 = por %p68, %p69
      %p72 = scmp.ne.s32.totalorder %s55, %s71
      %p73 = scmp.eq.s32.totalorder %s21, 0
      %p74 = por %p72, %p73
      %s76 = sadd.s32 %s75, 1
      %p79 = scmp.eq.s32.totalorder %s15, 1
      %p80 = scmp.ne.s32.totalorder %s75, %s77
      %p81 = scmp.eq.s32.totalorder %s15, 0
      %p82 = por %p80, %p81
      %p83 = scmp.ne.s32.totalorder %s75, %s77
      %p84 = scmp.eq.s32.totalorder %s20, 1
      %p85 = por %p83, %p84
      %p86 = scmp.ne.s32.totalorder %s77, %s78
      %p87 = scmp.eq.s32.totalorder %s20, 0
      %p88 = por %p86, %p87
      %p89 = scmp.ne.s32.totalorder %s77, %s78
      %p90 = scmp.eq.s32.totalorder %s21, 1
      %p91 = por %p89, %p90
      %p93 = scmp.ne.s32.totalorder %s78, %s92
      %p94 = scmp.eq.s32.totalorder %s21, 0
      %p95 = por %p93, %p94
      %s97 = sadd.s32 %s96, 1
      %p100 = scmp.eq.s32.totalorder %s15, 1
      %p101 = scmp.ne.s32.totalorder %s96, %s98
      %p102 = scmp.eq.s32.totalorder %s15, 0
      %p103 = por %p101, %p102
      %p104 = scmp.ne.s32.totalorder %s96, %s98
      %p105 = scmp.eq.s32.totalorder %s20, 1
      %p106 = por %p104, %p105
      %p107 = scmp.ne.s32.totalorder %s98, %s99
      %p108 = scmp.eq.s32.totalorder %s20, 0
      %p109 = por %p107, %p108
      %p110 = scmp.ne.s32.totalorder %s98, %s99
      %p111 = scmp.eq.s32.totalorder %s21, 1
      %p112 = por %p110, %p111
      %p114 = scmp.ne.s32.totalorder %s99, %s113
      %p115 = scmp.eq.s32.totalorder %s21, 0
      %p116 = por %p114, %p115
      %s118 = sadd.s32 %s117, 1
      %p121 = scmp.eq.s32.totalorder %s15, 1
      %p122 = scmp.ne.s32.totalorder %s117, %s119
      %p123 = scmp.eq.s32.totalorder %s15, 0
      %p124 = por %p122, %p123
      %p125 = scmp.ne.s32.totalorder %s117, %s119
      %p126 = scmp.eq.s32.totalorder %s20, 1
      %p127 = por %p125, %p126
      %p128 = scmp.ne.s32.totalorder %s119, %s120
      %p129 = scmp.eq.s32.totalorder %s20, 0
      %p130 = por %p128, %p129
      %p131 = scmp.ne.s32.totalorder %s119, %s120
      %p132 = scmp.eq.s32.totalorder %s21, 1
      %p133 = por %p131, %p132
      %p135 = scmp.ne.s32.totalorder %s120, %s134
      %p136 = scmp.eq.s32.totalorder %s21, 0
      %p137 = por %p135, %p136
      %s139 = sadd.s32 %s138, 1
      %p142 = scmp.eq.s32.totalorder %s15, 1
      %p143 = scmp.ne.s32.totalorder %s138, %s140
      %p144 = scmp.eq.s32.totalorder %s15, 0
      %p145 = por %p143, %p144
      %p146 = scmp.ne.s32.totalorder %s138, %s140
      %p147 = scmp.eq.s32.totalorder %s20, 1
      %p148 = por %p146, %p147
      %p149 = scmp.ne.s32.totalorder %s140, %s141
      %p150 = scmp.eq.s32.totalorder %s20, 0
      %p151 = por %p149, %p150
      %p152 = scmp.ne.s32.totalorder %s140, %s141
      %p153 = scmp.eq.s32.totalorder %s21, 1
      %p154 = por %p152, %p153
      %p156 = scmp.ne.s32.totalorder %s141, %s155
      %p157 = scmp.eq.s32.totalorder %s21, 0
      %p158 = por %p156, %p157
      %s160 = sadd.s32 %s159, 1
      %p163 = scmp.eq.s32.totalorder %s15, 1
      %p164 = scmp.ne.s32.totalorder %s159, %s161
      %p165 = scmp.eq.s32.totalorder %s15, 0
      %p166 = por %p164, %p165
      %p167 = scmp.ne.s32.totalorder %s159, %s161
      %p168 = scmp.eq.s32.totalorder %s20, 1
      %p169 = por %p167, %p168
      %p170 = scmp.ne.s32.totalorder %s161, %s162
      %p171 = scmp.eq.s32.totalorder %s20, 0
      %p172 = por %p170, %p171
      %p173 = scmp.ne.s32.totalorder %s161, %s162
      %p174 = scmp.eq.s32.totalorder %s21, 1
      %p175 = por %p173, %p174
      %p177 = scmp.ne.s32.totalorder %s162, %s176
      %p178 = scmp.eq.s32.totalorder %s21, 0
      %p179 = por %p177, %p178
      %s181 = sadd.s32 %s180, 1
      %p184 = scmp.eq.s32.totalorder %s15, 1
      %p185 = scmp.ne.s32.totalorder %s180, %s182
      %p186 = scmp.eq.s32.totalorder %s15, 0
      %p187 = por %p185, %p186
      %p188 = scmp.ne.s32.totalorder %s180, %s182
      %p189 = scmp.eq.s32.totalorder %s20, 1
      %p190 = por %p188, %p189
      %p191 = scmp.ne.s32.totalorder %s182, %s183
      %p192 = scmp.eq.s32.totalorder %s20, 0
      %p193 = por %p191, %p192
      %p194 = scmp.ne.s32.totalorder %s182, %s183
      %p195 = scmp.eq.s32.totalorder %s21, 1
      %p196 = por %p194, %p195
      %p198 = scmp.ne.s32.totalorder %s183, %s197
      %p199 = scmp.eq.s32.totalorder %s21, 0
      %p200 = por %p198, %p199
      %s202 = sadd.s32 %s201, 1
      %p205 = scmp.eq.s32.totalorder %s15, 1
      %p206 = scmp.ne.s32.totalorder %s201, %s203
      %p207 = scmp.eq.s32.totalorder %s15, 0
      %p208 = por %p206, %p207
      %p209 = scmp.ne.s32.totalorder %s201, %s203
      %p210 = scmp.eq.s32.totalorder %s20, 1
      %p211 = por %p209, %p210
      %p212 = scmp.ne.s32.totalorder %s203, %s204
      %p213 = scmp.eq.s32.totalorder %s20, 0
      %p214 = por %p212, %p213
      %p215 = scmp.ne.s32.totalorder %s203, %s204
      %p216 = scmp.eq.s32.totalorder %s21, 1
      %p217 = por %p215, %p216
      %p219 = scmp.ne.s32.totalorder %s204, %s218
      %p220 = scmp.eq.s32.totalorder %s21, 0
      %p221 = por %p219, %p220
      %s222 = ssub.s32 %s15, %s22
      %p223 = scmp.eq.s32.totalorder %s222, 0
      %s225 = sadd.s32 %s224, 1
      %s226 = scalar_select %p223, %s224, %s225
      %p229 = pneg %p223
      %p230 = scmp.eq.s32.totalorder %s15, 1
      %p231 = por %p229, %p230
      %p232 = scmp.ne.s32.totalorder %s224, %s227
      %p233 = scmp.eq.s32.totalorder %s15, 0
      %p234 = por %p232, %p233
      %p235 = scmp.ne.s32.totalorder %s224, %s227
      %p236 = scmp.eq.s32.totalorder %s20, 1
      %p237 = por %p235, %p236
      %p238 = scmp.ne.s32.totalorder %s227, %s228
      %p239 = scmp.eq.s32.totalorder %s20, 0
      %p240 = por %p238, %p239
      %p241 = scmp.ne.s32.totalorder %s227, %s228
      %p242 = scmp.eq.s32.totalorder %s21, 1
      %p243 = por %p241, %p242
      %p245 = scmp.ne.s32.totalorder %s228, %s244
      %p246 = scmp.eq.s32.totalorder %s21, 0
      %p247 = por %p245, %p246
      %p248 = scmp.le.s32.totalorder 1, %s15
      %p249 = scmp.lt.s32.totalorder %s15, 3
      %p250 = pnand %p248, %p249
      %p251 = pneg %p250
      // Predicated region
      $region9: #{affinity_merge_forward.1} parent=5 // pred_check
        _
      $region10: #{affinity_merge_forward.1} parent=5 // pred_check_branch
        %253 = sbr.rel (%p250) target = $region12
      $region11: #{affinity_merge_forward.1} parent=5 // pred_region
        %s254 = ssub.s32 %s15, 1
        // Predicated region
        $region13: #{affinity_merge_forward.1} parent=11 // pred_check
          %p255 = pneg %p88
        $region14: #{affinity_merge_forward.1} parent=11 // pred_check_branch
          %257 = sbr.rel (%p255) target = $region16
        $region15: #{affinity_merge_forward.1} parent=11 // pred_region
          _
        $region16: #{affinity_merge_forward.1} parent=11 // pred_fallthru
          _
        // Predicated region
        $region17: #{affinity_merge_forward.1} parent=11 // pred_check
          %p258 = pneg %p109
        $region18: #{affinity_merge_forward.1} parent=11 // pred_check_branch
          %260 = sbr.rel (%p258) target = $region20
        $region19: #{affinity_merge_forward.1} parent=11 // pred_region
          _
        $region20: #{affinity_merge_forward.1} parent=11 // pred_fallthru
          _
        // Predicated region
        $region21: #{affinity_merge_forward.1} parent=11 // pred_check
          %p261 = pneg %p130
        $region22: #{affinity_merge_forward.1} parent=11 // pred_check_branch
          %263 = sbr.rel (%p261) target = $region24
        $region23: #{affinity_merge_forward.1} parent=11 // pred_region
          _
        $region24: #{affinity_merge_forward.1} parent=11 // pred_fallthru
          _
        // Predicated region
        $region25: #{affinity_merge_forward.1} parent=11 // pred_check
          %p264 = pneg %p151
        $region26: #{affinity_merge_forward.1} parent=11 // pred_check_branch
          %266 = sbr.rel (%p264) target = $region28
        $region27: #{affinity_merge_forward.1} parent=11 // pred_region
          _
        $region28: #{affinity_merge_forward.1} parent=11 // pred_fallthru
          _
        // Predicated region
        $region29: #{affinity_merge_forward.1} parent=11 // pred_check
          %p267 = pneg %p172
        $region30: #{affinity_merge_forward.1} parent=11 // pred_check_branch
          %269 = sbr.rel (%p267) target = $region32
        $region31: #{affinity_merge_forward.1} parent=11 // pred_region
          _
        $region32: #{affinity_merge_forward.1} parent=11 // pred_fallthru
          _
        // Predicated region
        $region33: #{affinity_merge_forward.1} parent=11 // pred_check
          %p270 = pneg %p193
        $region34: #{affinity_merge_forward.1} parent=11 // pred_check_branch
          %272 = sbr.rel (%p270) target = $region36
        $region35: #{affinity_merge_forward.1} parent=11 // pred_region
          _
        $region36: #{affinity_merge_forward.1} parent=11 // pred_fallthru
          _
        // Predicated region
        $region37: #{affinity_merge_forward.1} parent=11 // pred_check
          %p273 = pneg %p214
        $region38: #{affinity_merge_forward.1} parent=11 // pred_check_branch
          %275 = sbr.rel (%p273) target = $region40
        $region39: #{affinity_merge_forward.1} parent=11 // pred_region
          _
        $region40: #{affinity_merge_forward.1} parent=11 // pred_fallthru
          _
      $region12: #{affinity_merge_forward.1} parent=5 // pred_fallthru
        _
      %p276 = scmp.lt.s32.totalorder %s15, 2
      // Predicated region
      $region41: #{affinity_merge_forward.1} parent=5 // pred_check
        %p277 = pneg %p276
      $region42: #{affinity_merge_forward.1} parent=5 // pred_check_branch
        %279 = sbr.rel (%p277) target = $region44
      $region43: #{affinity_merge_forward.1} parent=5 // pred_region
        // Predicated region
        $region45: #{affinity_merge_forward.1} parent=43 // pred_check
          %p280 = pneg %p35
        $region46: #{affinity_merge_forward.1} parent=43 // pred_check_branch
          %282 = sbr.rel (%p280) target = $region48
        $region47: #{affinity_merge_forward.1} parent=43 // pred_region
          %s283 = smul.u32 32, %s15
          %s284 = ssub.s32 63, %s283
          %p285 = scmp.lt.s32.totalorder %s284, 32
          %s286 = scalar_select %p285, %s284, 32
          %s287 = smul.u32 8, %s286
          %p288 = scmp.lt.s32.totalorder %s283, 62
          %s289 = scalar_select %p288, %s283, 62
          %s290 = smul.addr %s289, 8
          %s291 = scalar_lea.vmem %s0, %s290
          %s292 = smul.u32 32, %s15
          %s293 = ssub.s32 63, %s292
          %p294 = scmp.lt.s32.totalorder %s293, 32
          %s295 = scalar_select %p294, %s293, 32
          %s296 = smul.u32 8, %s295
        $region48: #{affinity_merge_forward.1} parent=43 // pred_fallthru
          _
        // Predicated region
        $region49: #{affinity_merge_forward.1} parent=43 // pred_check
          %p297 = pneg %p61
        $region50: #{affinity_merge_forward.1} parent=43 // pred_check_branch
          %299 = sbr.rel (%p297) target = $region52
        $region51: #{affinity_merge_forward.1} parent=43 // pred_region
          %s300 = smul.u32 32, %s15
          %s301 = ssub.s32 63, %s300
          %p302 = scmp.lt.s32.totalorder %s301, 32
          %s303 = scalar_select %p302, %s301, 32
          %s304 = smul.u32 8, %s303
          %p305 = scmp.lt.s32.totalorder %s300, 62
          %s306 = scalar_select %p305, %s300, 62
          %s307 = smul.addr %s306, 8
          %s308 = scalar_lea.vmem %s1, %s307
          %s309 = smul.u32 32, %s15
          %s310 = ssub.s32 63, %s309
          %p311 = scmp.lt.s32.totalorder %s310, 32
          %s312 = scalar_select %p311, %s310, 32
          %s313 = smul.u32 8, %s312
        $region52: #{affinity_merge_forward.1} parent=43 // pred_fallthru
          _
      $region44: #{affinity_merge_forward.1} parent=5 // pred_fallthru
        _
      %p314 = scmp.le.s32.totalorder 1, %s15
      %p315 = scmp.lt.s32.totalorder %s15, 3
      %p316 = pnand %p314, %p315
      %p317 = pneg %p316
      // Predicated region
      $region53: #{affinity_merge_forward.1} parent=5 // pred_check
        _
      $region54: #{affinity_merge_forward.1} parent=5 // pred_check_branch
        %319 = sbr.rel (%p316) target = $region56
      $region55: #{affinity_merge_forward.1} parent=5 // pred_region
        %s320 = ssub.s32 %s15, 1
        %s321 = smul.u32 32, %s20
        %s322 = ssub.s32 63, %s321
        %p323 = scmp.lt.s32.totalorder %s322, 32
        %s324 = scalar_select %p323, %s322, 32
        %s325 = smul.u32 8, %s324
        %p326 = scmp.lt.s32.totalorder %s321, 62
        %s327 = scalar_select %p326, %s321, 62
        %s328 = smul.addr %s327, 8
        %s329 = scalar_lea.vmem %s0, %s328
        %p330 = pneg %p41
        %p331 = pneg %p38
        %s332 = smul.u32 32, %s20
        %s333 = ssub.s32 63, %s332
        %p334 = scmp.lt.s32.totalorder %s333, 32
        %s335 = scalar_select %p334, %s333, 32
        %s336 = smul.u32 8, %s335
        %p337 = scmp.lt.s32.totalorder %s332, 62
        %s338 = scalar_select %p337, %s332, 62
        %s339 = smul.addr %s338, 8
        %s340 = scalar_lea.vmem %s1, %s339
        %p341 = pneg %p67
        %p342 = pneg %p64
        %p343 = pneg %p88
        %p344 = pneg %p85
        %p345 = pneg %p109
        %p346 = pneg %p106
        %p347 = pneg %p130
        %p348 = pneg %p127
        %p349 = pneg %p151
        %p350 = pneg %p148
        %p351 = pneg %p172
        %p352 = pneg %p169
        %p353 = pneg %p193
        %p354 = pneg %p190
        %p355 = pneg %p214
        %p356 = pneg %p211
        %p357 = pneg %p240
        %p358 = pneg %p237
        %s359 = sand.u32 %s227, 1
        %s360 = sand.u32 %s227, 1
        %s361 = smul.addr %s360, 256
        %s362 = scalar_lea.vmem [#allocation2], %s361
        %s363 = smul.u32 32, %s20
        %s364 = ssub.s32 63, %s363
        %p365 = scmp.lt.s32.totalorder %s364, 32
        %s366 = scalar_select %p365, %s364, 32
        %s367 = smul.u32 8, %s366
        %p368 = scmp.lt.s32.totalorder %s363, 62
        %s369 = scalar_select %p368, %s363, 62
        %s370 = smul.addr %s369, 8
        %s371 = scalar_lea.vmem %s0, %s370
        %s372 = smul.u32 32, %s20
        %s373 = ssub.s32 63, %s372
        %p374 = scmp.lt.s32.totalorder %s373, 32
        %s375 = scalar_select %p374, %s373, 32
        %s376 = smul.u32 8, %s375
        %s377 = smul.u32 32, %s20
        %s378 = ssub.s32 63, %s377
        %p379 = scmp.lt.s32.totalorder %s378, 32
        %s380 = scalar_select %p379, %s378, 32
        %s381 = smul.u32 8, %s380
        %p382 = scmp.lt.s32.totalorder %s377, 62
        %s383 = scalar_select %p382, %s377, 62
        %s384 = smul.addr %s383, 8
        %s385 = scalar_lea.vmem %s1, %s384
        %s386 = smul.u32 32, %s20
        %s387 = ssub.s32 63, %s386
        %p388 = scmp.lt.s32.totalorder %s387, 32
        %s389 = scalar_select %p388, %s387, 32
        %s390 = smul.u32 8, %s389
        %s391 = smul.u32 32, %s20
        %s392 = ssub.s32 63, %s391
        %p393 = scmp.lt.s32.totalorder %s392, 32
        %s394 = scalar_select %p393, %s392, 32
        %s395 = smul.u32 8, %s394
        %v396 = vld [vmem:[%s371] sm:$0xff]
        %v397 = vld [vmem:[%s371 + $0x8] sm:$0xff]
        %v398 = vld [vmem:[%s371 + $0x10] sm:$0xff]
        %v399 = vld [vmem:[%s371 + $0x18] sm:$0xff]
        %v400 = vld [vmem:[%s371 + $0x20] sm:$0xff]
        %v401 = vld [vmem:[%s371 + $0x28] sm:$0xff]
        %v402 = vld [vmem:[%s371 + $0x30] sm:$0xff]
        %v403 = vld [vmem:[%s371 + $0x38] sm:$0xff]
        %v404 = vld [vmem:[%s371 + $0x40] sm:$0xff]
        %v405 = vld [vmem:[%s371 + $0x48] sm:$0xff]
        %v406 = vld [vmem:[%s371 + $0x50] sm:$0xff]
        %v407 = vld [vmem:[%s371 + $0x58] sm:$0xff]
        %v408 = vld [vmem:[%s371 + $0x60] sm:$0xff]
        %v409 = vld [vmem:[%s371 + $0x68] sm:$0xff]
        %v410 = vld [vmem:[%s371 + $0x70] sm:$0xff]
        %v411 = vld [vmem:[%s371 + $0x78] sm:$0xff]
        %v412 = vld [vmem:[%s371 + $0x80] sm:$0xff]
        %v413 = vld [vmem:[%s371 + $0x88] sm:$0xff]
        %v414 = vld [vmem:[%s371 + $0x90] sm:$0xff]
        %v415 = vld [vmem:[%s371 + $0x98] sm:$0xff]
        %v416 = vld [vmem:[%s371 + $0xa0] sm:$0xff]
        %v417 = vld [vmem:[%s371 + $0xa8] sm:$0xff]
        %v418 = vld [vmem:[%s371 + $0xb0] sm:$0xff]
        %v419 = vld [vmem:[%s371 + $0xb8] sm:$0xff]
        %v420 = vld [vmem:[%s371 + $0xc0] sm:$0xff]
        %v421 = vld [vmem:[%s371 + $0xc8] sm:$0xff]
        %v422 = vld [vmem:[%s371 + $0xd0] sm:$0xff]
        %v423 = vld [vmem:[%s371 + $0xd8] sm:$0xff]
        %v424 = vld [vmem:[%s371 + $0xe0] sm:$0xff]
        %v425 = vld [vmem:[%s371 + $0xe8] sm:$0xff]
        %v426 = vld [vmem:[%s371 + $0xf0] sm:$0xff]
        %v427 = vld [vmem:[%s371 + $0xf8] sm:$0xff]
        %v428 = vld [vmem:[%s385] sm:$0xff]
        %v429 = vld [vmem:[%s385 + $0x8] sm:$0xff]
        %v430 = vld [vmem:[%s385 + $0x10] sm:$0xff]
        %v431 = vld [vmem:[%s385 + $0x18] sm:$0xff]
        %v432 = vld [vmem:[%s385 + $0x20] sm:$0xff]
        %v433 = vld [vmem:[%s385 + $0x28] sm:$0xff]
        %v434 = vld [vmem:[%s385 + $0x30] sm:$0xff]
        %v435 = vld [vmem:[%s385 + $0x38] sm:$0xff]
        %v436 = vld [vmem:[%s385 + $0x40] sm:$0xff]
        %v437 = vld [vmem:[%s385 + $0x48] sm:$0xff]
        %v438 = vld [vmem:[%s385 + $0x50] sm:$0xff]
        %v439 = vld [vmem:[%s385 + $0x58] sm:$0xff]
        %v440 = vld [vmem:[%s385 + $0x60] sm:$0xff]
        %v441 = vld [vmem:[%s385 + $0x68] sm:$0xff]
        %v442 = vld [vmem:[%s385 + $0x70] sm:$0xff]
        %v443 = vld [vmem:[%s385 + $0x78] sm:$0xff]
        %v444 = vld [vmem:[%s385 + $0x80] sm:$0xff]
        %v445 = vld [vmem:[%s385 + $0x88] sm:$0xff]
        %v446 = vld [vmem:[%s385 + $0x90] sm:$0xff]
        %v447 = vld [vmem:[%s385 + $0x98] sm:$0xff]
        %v448 = vld [vmem:[%s385 + $0xa0] sm:$0xff]
        %v449 = vld [vmem:[%s385 + $0xa8] sm:$0xff]
        %v450 = vld [vmem:[%s385 + $0xb0] sm:$0xff]
        %v451 = vld [vmem:[%s385 + $0xb8] sm:$0xff]
        %v452 = vld [vmem:[%s385 + $0xc0] sm:$0xff]
        %v453 = vld [vmem:[%s385 + $0xc8] sm:$0xff]
        %v454 = vld [vmem:[%s385 + $0xd0] sm:$0xff]
        %v455 = vld [vmem:[%s385 + $0xd8] sm:$0xff]
        %v456 = vld [vmem:[%s385 + $0xe0] sm:$0xff]
        %v457 = vld [vmem:[%s385 + $0xe8] sm:$0xff]
        %v458 = vld [vmem:[%s385 + $0xf0] sm:$0xff]
        %v459 = vld [vmem:[%s385 + $0xf8] sm:$0xff]
        %v460 = vld [vmem:[%s2] sm:$0xff]
        %v461 = vld [vmem:[%s2 + $0x8] sm:$0xff]
        %v462 = vld [vmem:[%s2 + $0x10] sm:$0xff]
        %v463 = vld [vmem:[%s2 + $0x18] sm:$0xff]
        %v464 = vld [vmem:[%s3] sm:$0xff]
        %v465 = vld [vmem:[%s3 + $0x8] sm:$0xff]
        %v466 = vld [vmem:[%s3 + $0x10] sm:$0xff]
        %v467 = vld [vmem:[%s3 + $0x18] sm:$0xff]
        %vm468 = vcmask 261120
        %v470 = vsel %vm468, %v428, 0
        %v473 = vsel %vm468, %v429, 0
        %v476 = vsel %vm468, %v430, 0
        %v479 = vsel %vm468, %v431, 0
        %v482 = vsel %vm468, %v432, 0
        %v485 = vsel %vm468, %v433, 0
        %v488 = vsel %vm468, %v434, 0
        %v491 = vsel %vm468, %v435, 0
        %v494 = vsel %vm468, %v436, 0
        %v497 = vsel %vm468, %v437, 0
        %v500 = vsel %vm468, %v438, 0
        %v503 = vsel %vm468, %v439, 0
        %v506 = vsel %vm468, %v440, 0
        %v509 = vsel %vm468, %v441, 0
        %v512 = vsel %vm468, %v442, 0
        %v515 = vsel %vm468, %v443, 0
        %v518 = vsel %vm468, %v444, 0
        %v521 = vsel %vm468, %v445, 0
        %v524 = vsel %vm468, %v446, 0
        %v527 = vsel %vm468, %v447, 0
        %v530 = vsel %vm468, %v448, 0
        %v533 = vsel %vm468, %v449, 0
        %v536 = vsel %vm468, %v450, 0
        %v539 = vsel %vm468, %v451, 0
        %v542 = vsel %vm468, %v452, 0
        %v545 = vsel %vm468, %v453, 0
        %v548 = vsel %vm468, %v454, 0
        %v551 = vsel %vm468, %v455, 0
        %v554 = vsel %vm468, %v456, 0
        %v557 = vsel %vm468, %v457, 0
        %v560 = vsel %vm468, %v458, 0
        %v563 = vsel %vm468, %v459, 0
        %565 = vmatpush.msra.mxu0 0.0
        %566 = vmatpush.msra.mxu0 0.0
        %567 = vmatpush.msra.mxu0 0.0
        %568 = vmatpush.msra.mxu0 0.0
        %569 = vmatpush.msra.mxu0 0.0
        %570 = vmatpush.msra.mxu0 0.0
        %571 = vmatpush.msra.mxu0 0.0
        %572 = vmatpush.msra.mxu0 0.0
        %573 = vmatpush.msra.mxu0 0.0
        %574 = vmatpush.msra.mxu0 0.0
        %575 = vmatpush.msra.mxu0 0.0
        %576 = vmatpush.msra.mxu0 0.0
        %577 = vmatpush.msra.mxu0 %v467
        %578 = vmatpush.msra.mxu0 %v466
        %579 = vmatpush.msra.mxu0 %v465
        %580 = vmatpush.msra.mxu0 %v464
        %581 = vmatmul.f32.gmra.mxu0 %v470
        %v582 = vpop.f32.mrf.mxu0
        %v583 = vadd.f32 0.0, %v582
        %584 = vmatmul.f32.gmra.mxu0 %v473
        %v585 = vpop.f32.mrf.mxu0
        %v586 = vadd.f32 0.0, %v585
        %587 = vmatmul.f32.gmra.mxu0 %v476
        %v588 = vpop.f32.mrf.mxu0
        %v589 = vadd.f32 0.0, %v588
        %590 = vmatmul.f32.gmra.mxu0 %v479
        %v591 = vpop.f32.mrf.mxu0
        %v592 = vadd.f32 0.0, %v591
        %593 = vmatmul.f32.gmra.mxu0 %v482
        %v594 = vpop.f32.mrf.mxu0
        %v595 = vadd.f32 0.0, %v594
        %596 = vmatmul.f32.gmra.mxu0 %v485
        %v597 = vpop.f32.mrf.mxu0
        %v598 = vadd.f32 0.0, %v597
        %599 = vmatmul.f32.gmra.mxu0 %v488
        %v600 = vpop.f32.mrf.mxu0
        %v601 = vadd.f32 0.0, %v600
        %602 = vmatmul.f32.gmra.mxu0 %v491
        %v603 = vpop.f32.mrf.mxu0
        %v604 = vadd.f32 0.0, %v603
        %605 = vmatmul.f32.gmra.mxu0 %v494
        %v606 = vpop.f32.mrf.mxu0
        %v607 = vadd.f32 0.0, %v606
        %608 = vmatmul.f32.gmra.mxu0 %v497
        %v609 = vpop.f32.mrf.mxu0
        %v610 = vadd.f32 0.0, %v609
        %611 = vmatmul.f32.gmra.mxu0 %v500
        %v612 = vpop.f32.mrf.mxu0
        %v613 = vadd.f32 0.0, %v612
        %614 = vmatmul.f32.gmra.mxu0 %v503
        %v615 = vpop.f32.mrf.mxu0
        %v616 = vadd.f32 0.0, %v615
        %617 = vmatmul.f32.gmra.mxu0 %v506
        %v618 = vpop.f32.mrf.mxu0
        %v619 = vadd.f32 0.0, %v618
        %620 = vmatmul.f32.gmra.mxu0 %v509
        %v621 = vpop.f32.mrf.mxu0
        %v622 = vadd.f32 0.0, %v621
        %623 = vmatmul.f32.gmra.mxu0 %v512
        %v624 = vpop.f32.mrf.mxu0
        %v625 = vadd.f32 0.0, %v624
        %626 = vmatmul.f32.gmra.mxu0 %v515
        %v627 = vpop.f32.mrf.mxu0
        %v628 = vadd.f32 0.0, %v627
        %629 = vmatmul.f32.gmra.mxu0 %v518
        %v630 = vpop.f32.mrf.mxu0
        %v631 = vadd.f32 0.0, %v630
        %632 = vmatmul.f32.gmra.mxu0 %v521
        %v633 = vpop.f32.mrf.mxu0
        %v634 = vadd.f32 0.0, %v633
        %635 = vmatmul.f32.gmra.mxu0 %v524
        %v636 = vpop.f32.mrf.mxu0
        %v637 = vadd.f32 0.0, %v636
        %638 = vmatmul.f32.gmra.mxu0 %v527
        %v639 = vpop.f32.mrf.mxu0
        %v640 = vadd.f32 0.0, %v639
        %641 = vmatmul.f32.gmra.mxu0 %v530
        %v642 = vpop.f32.mrf.mxu0
        %v643 = vadd.f32 0.0, %v642
        %644 = vmatmul.f32.gmra.mxu0 %v533
        %v645 = vpop.f32.mrf.mxu0
        %v646 = vadd.f32 0.0, %v645
        %647 = vmatmul.f32.gmra.mxu0 %v536
        %v648 = vpop.f32.mrf.mxu0
        %v649 = vadd.f32 0.0, %v648
        %650 = vmatmul.f32.gmra.mxu0 %v539
        %v651 = vpop.f32.mrf.mxu0
        %v652 = vadd.f32 0.0, %v651
        %653 = vmatmul.f32.gmra.mxu0 %v542
        %v654 = vpop.f32.mrf.mxu0
        %v655 = vadd.f32 0.0, %v654
        %656 = vmatmul.f32.gmra.mxu0 %v545
        %v657 = vpop.f32.mrf.mxu0
        %v658 = vadd.f32 0.0, %v657
        %659 = vmatmul.f32.gmra.mxu0 %v548
        %v660 = vpop.f32.mrf.mxu0
        %v661 = vadd.f32 0.0, %v660
        %662 = vmatmul.f32.gmra.mxu0 %v551
        %v663 = vpop.f32.mrf.mxu0
        %v664 = vadd.f32 0.0, %v663
        %665 = vmatmul.f32.gmra.mxu0 %v554
        %v666 = vpop.f32.mrf.mxu0
        %v667 = vadd.f32 0.0, %v666
        %668 = vmatmul.f32.gmra.mxu0 %v557
        %v669 = vpop.f32.mrf.mxu0
        %v670 = vadd.f32 0.0, %v669
        %671 = vmatmul.f32.gmra.mxu0 %v560
        %v672 = vpop.f32.mrf.mxu0
        %v673 = vadd.f32 0.0, %v672
        %674 = vmatmul.f32.gmra.mxu0 %v563
        %v675 = vpop.f32.mrf.mxu0
        %v676 = vadd.f32 0.0, %v675
        %677 = vdwg.mxu0
        %v679 = vsel %vm468, %v396, 0
        %v682 = vsel %vm468, %v397, 0
        %v685 = vsel %vm468, %v398, 0
        %v688 = vsel %vm468, %v399, 0
        %v691 = vsel %vm468, %v400, 0
        %v694 = vsel %vm468, %v401, 0
        %v697 = vsel %vm468, %v402, 0
        %v700 = vsel %vm468, %v403, 0
        %v703 = vsel %vm468, %v404, 0
        %v706 = vsel %vm468, %v405, 0
        %v709 = vsel %vm468, %v406, 0
        %v712 = vsel %vm468, %v407, 0
        %v715 = vsel %vm468, %v408, 0
        %v718 = vsel %vm468, %v409, 0
        %v721 = vsel %vm468, %v410, 0
        %v724 = vsel %vm468, %v411, 0
        %v727 = vsel %vm468, %v412, 0
        %v730 = vsel %vm468, %v413, 0
        %v733 = vsel %vm468, %v414, 0
        %v736 = vsel %vm468, %v415, 0
        %v739 = vsel %vm468, %v416, 0
        %v742 = vsel %vm468, %v417, 0
        %v745 = vsel %vm468, %v418, 0
        %v748 = vsel %vm468, %v419, 0
        %v751 = vsel %vm468, %v420, 0
        %v754 = vsel %vm468, %v421, 0
        %v757 = vsel %vm468, %v422, 0
        %v760 = vsel %vm468, %v423, 0
        %v763 = vsel %vm468, %v424, 0
        %v766 = vsel %vm468, %v425, 0
        %v769 = vsel %vm468, %v426, 0
        %v772 = vsel %vm468, %v427, 0
        %774 = vmatpush.msra.mxu0 0.0
        %775 = vmatpush.msra.mxu0 0.0
        %776 = vmatpush.msra.mxu0 0.0
        %777 = vmatpush.msra.mxu0 0.0
        %778 = vmatpush.msra.mxu0 0.0
        %779 = vmatpush.msra.mxu0 0.0
        %780 = vmatpush.msra.mxu0 0.0
        %781 = vmatpush.msra.mxu0 0.0
        %782 = vmatpush.msra.mxu0 0.0
        %783 = vmatpush.msra.mxu0 0.0
        %784 = vmatpush.msra.mxu0 0.0
        %785 = vmatpush.msra.mxu0 0.0
        %786 = vmatpush.msra.mxu0 %v463
        %787 = vmatpush.msra.mxu0 %v462
        %788 = vmatpush.msra.mxu0 %v461
        %789 = vmatpush.msra.mxu0 %v460
        %790 = vmatmul.f32.gmra.mxu0 %v679
        %v791 = vpop.f32.mrf.mxu0
        %v792 = vadd.f32 %v583, %v791
        %793 = vmatmul.f32.gmra.mxu0 %v682
        %v794 = vpop.f32.mrf.mxu0
        %v795 = vadd.f32 %v586, %v794
        %796 = vmatmul.f32.gmra.mxu0 %v685
        %v797 = vpop.f32.mrf.mxu0
        %v798 = vadd.f32 %v589, %v797
        %799 = vmatmul.f32.gmra.mxu0 %v688
        %v800 = vpop.f32.mrf.mxu0
        %v801 = vadd.f32 %v592, %v800
        %802 = vmatmul.f32.gmra.mxu0 %v691
        %v803 = vpop.f32.mrf.mxu0
        %v804 = vadd.f32 %v595, %v803
        %805 = vmatmul.f32.gmra.mxu0 %v694
        %v806 = vpop.f32.mrf.mxu0
        %v807 = vadd.f32 %v598, %v806
        %808 = vmatmul.f32.gmra.mxu0 %v697
        %v809 = vpop.f32.mrf.mxu0
        %v810 = vadd.f32 %v601, %v809
        %811 = vmatmul.f32.gmra.mxu0 %v700
        %v812 = vpop.f32.mrf.mxu0
        %v813 = vadd.f32 %v604, %v812
        %814 = vmatmul.f32.gmra.mxu0 %v703
        %v815 = vpop.f32.mrf.mxu0
        %v816 = vadd.f32 %v607, %v815
        %817 = vmatmul.f32.gmra.mxu0 %v706
        %v818 = vpop.f32.mrf.mxu0
        %v819 = vadd.f32 %v610, %v818
        %820 = vmatmul.f32.gmra.mxu0 %v709
        %v821 = vpop.f32.mrf.mxu0
        %v822 = vadd.f32 %v613, %v821
        %823 = vmatmul.f32.gmra.mxu0 %v712
        %v824 = vpop.f32.mrf.mxu0
        %v825 = vadd.f32 %v616, %v824
        %826 = vmatmul.f32.gmra.mxu0 %v715
        %v827 = vpop.f32.mrf.mxu0
        %v828 = vadd.f32 %v619, %v827
        %829 = vmatmul.f32.gmra.mxu0 %v718
        %v830 = vpop.f32.mrf.mxu0
        %v831 = vadd.f32 %v622, %v830
        %832 = vmatmul.f32.gmra.mxu0 %v721
        %v833 = vpop.f32.mrf.mxu0
        %v834 = vadd.f32 %v625, %v833
        %835 = vmatmul.f32.gmra.mxu0 %v724
        %v836 = vpop.f32.mrf.mxu0
        %v837 = vadd.f32 %v628, %v836
        %838 = vmatmul.f32.gmra.mxu0 %v727
        %v839 = vpop.f32.mrf.mxu0
        %v840 = vadd.f32 %v631, %v839
        %841 = vmatmul.f32.gmra.mxu0 %v730
        %v842 = vpop.f32.mrf.mxu0
        %v843 = vadd.f32 %v634, %v842
        %844 = vmatmul.f32.gmra.mxu0 %v733
        %v845 = vpop.f32.mrf.mxu0
        %v846 = vadd.f32 %v637, %v845
        %847 = vmatmul.f32.gmra.mxu0 %v736
        %v848 = vpop.f32.mrf.mxu0
        %v849 = vadd.f32 %v640, %v848
        %850 = vmatmul.f32.gmra.mxu0 %v739
        %v851 = vpop.f32.mrf.mxu0
        %v852 = vadd.f32 %v643, %v851
        %853 = vmatmul.f32.gmra.mxu0 %v742
        %v854 = vpop.f32.mrf.mxu0
        %v855 = vadd.f32 %v646, %v854
        %856 = vmatmul.f32.gmra.mxu0 %v745
        %v857 = vpop.f32.mrf.mxu0
        %v858 = vadd.f32 %v649, %v857
        %859 = vmatmul.f32.gmra.mxu0 %v748
        %v860 = vpop.f32.mrf.mxu0
        %v861 = vadd.f32 %v652, %v860
        %862 = vmatmul.f32.gmra.mxu0 %v751
        %v863 = vpop.f32.mrf.mxu0
        %v864 = vadd.f32 %v655, %v863
        %865 = vmatmul.f32.gmra.mxu0 %v754
        %v866 = vpop.f32.mrf.mxu0
        %v867 = vadd.f32 %v658, %v866
        %868 = vmatmul.f32.gmra.mxu0 %v757
        %v869 = vpop.f32.mrf.mxu0
        %v870 = vadd.f32 %v661, %v869
        %871 = vmatmul.f32.gmra.mxu0 %v760
        %v872 = vpop.f32.mrf.mxu0
        %v873 = vadd.f32 %v664, %v872
        %874 = vmatmul.f32.gmra.mxu0 %v763
        %v875 = vpop.f32.mrf.mxu0
        %v876 = vadd.f32 %v667, %v875
        %877 = vmatmul.f32.gmra.mxu0 %v766
        %v878 = vpop.f32.mrf.mxu0
        %v879 = vadd.f32 %v670, %v878
        %880 = vmatmul.f32.gmra.mxu0 %v769
        %v881 = vpop.f32.mrf.mxu0
        %v882 = vadd.f32 %v673, %v881
        %883 = vmatmul.f32.gmra.mxu0 %v772
        %v884 = vpop.f32.mrf.mxu0
        %v885 = vadd.f32 %v676, %v884
        %886 = vdwg.mxu0
        %v887 = vld [vmem:[%s4] sm:$0x1]
        %v889 = vperm.slane %v887, 0
        %v891 = vadd.f32 %v792, %v889
        %v892 = vadd.f32 %v795, %v889
        %v893 = vadd.f32 %v798, %v889
        %v894 = vadd.f32 %v801, %v889
        %v895 = vadd.f32 %v804, %v889
        %v896 = vadd.f32 %v807, %v889
        %v897 = vadd.f32 %v810, %v889
        %v898 = vadd.f32 %v813, %v889
        %v899 = vadd.f32 %v816, %v889
        %v900 = vadd.f32 %v819, %v889
        %v901 = vadd.f32 %v822, %v889
        %v902 = vadd.f32 %v825, %v889
        %v903 = vadd.f32 %v828, %v889
        %v904 = vadd.f32 %v831, %v889
        %v905 = vadd.f32 %v834, %v889
        %v906 = vadd.f32 %v837, %v889
        %v907 = vadd.f32 %v840, %v889
        %v908 = vadd.f32 %v843, %v889
        %v909 = vadd.f32 %v846, %v889
        %v910 = vadd.f32 %v849, %v889
        %v911 = vadd.f32 %v852, %v889
        %v912 = vadd.f32 %v855, %v889
        %v913 = vadd.f32 %v858, %v889
        %v914 = vadd.f32 %v861, %v889
        %v915 = vadd.f32 %v864, %v889
        %v916 = vadd.f32 %v867, %v889
        %v917 = vadd.f32 %v870, %v889
        %v918 = vadd.f32 %v873, %v889
        %v919 = vadd.f32 %v876, %v889
        %v920 = vadd.f32 %v879, %v889
        %v921 = vadd.f32 %v882, %v889
        %v922 = vadd.f32 %v885, %v889
        %v923 = vmul.f32 %v891, 0.5
        %v924 = vmul.f32 %v892, 0.5
        %v925 = vmul.f32 %v893, 0.5
        %v926 = vmul.f32 %v894, 0.5
        %v927 = vmul.f32 %v895, 0.5
        %v928 = vmul.f32 %v896, 0.5
        %v929 = vmul.f32 %v897, 0.5
        %v930 = vmul.f32 %v898, 0.5
        %v931 = vmul.f32 %v899, 0.5
        %v932 = vmul.f32 %v900, 0.5
        %v933 = vmul.f32 %v901, 0.5
        %v934 = vmul.f32 %v902, 0.5
        %v935 = vmul.f32 %v903, 0.5
        %v936 = vmul.f32 %v904, 0.5
        %v937 = vmul.f32 %v905, 0.5
        %v938 = vmul.f32 %v906, 0.5
        %v939 = vmul.f32 %v907, 0.5
        %v940 = vmul.f32 %v908, 0.5
        %v941 = vmul.f32 %v909, 0.5
        %v942 = vmul.f32 %v910, 0.5
        %v943 = vmul.f32 %v911, 0.5
        %v944 = vmul.f32 %v912, 0.5
        %v945 = vmul.f32 %v913, 0.5
        %v946 = vmul.f32 %v914, 0.5
        %v947 = vmul.f32 %v915, 0.5
        %v948 = vmul.f32 %v916, 0.5
        %v949 = vmul.f32 %v917, 0.5
        %v950 = vmul.f32 %v918, 0.5
        %v951 = vmul.f32 %v919, 0.5
        %v952 = vmul.f32 %v920, 0.5
        %v953 = vmul.f32 %v921, 0.5
        %v954 = vmul.f32 %v922, 0.5
        %v955 = vtanh.pop %v923
        %v956 = vtanh.pop %v924
        %v957 = vtanh.pop %v925
        %v958 = vtanh.pop %v926
        %v959 = vtanh.pop %v927
        %v960 = vtanh.pop %v928
        %v961 = vtanh.pop %v929
        %v962 = vtanh.pop %v930
        %v963 = vtanh.pop %v931
        %v964 = vtanh.pop %v932
        %v965 = vtanh.pop %v933
        %v966 = vtanh.pop %v934
        %v967 = vtanh.pop %v935
        %v968 = vtanh.pop %v936
        %v969 = vtanh.pop %v937
        %v970 = vtanh.pop %v938
        %v971 = vtanh.pop %v939
        %v972 = vtanh.pop %v940
        %v973 = vtanh.pop %v941
        %v974 = vtanh.pop %v942
        %v975 = vtanh.pop %v943
        %v976 = vtanh.pop %v944
        %v977 = vtanh.pop %v945
        %v978 = vtanh.pop %v946
        %v979 = vtanh.pop %v947
        %v980 = vtanh.pop %v948
        %v981 = vtanh.pop %v949
        %v982 = vtanh.pop %v950
        %v983 = vtanh.pop %v951
        %v984 = vtanh.pop %v952
        %v985 = vtanh.pop %v953
        %v986 = vtanh.pop %v954
        %v987 = vadd.f32 %v955, 1.0
        %v988 = vadd.f32 %v956, 1.0
        %v989 = vadd.f32 %v957, 1.0
        %v990 = vadd.f32 %v958, 1.0
        %v991 = vadd.f32 %v959, 1.0
        %v992 = vadd.f32 %v960, 1.0
        %v993 = vadd.f32 %v961, 1.0
        %v994 = vadd.f32 %v962, 1.0
        %v995 = vadd.f32 %v963, 1.0
        %v996 = vadd.f32 %v964, 1.0
        %v997 = vadd.f32 %v965, 1.0
        %v998 = vadd.f32 %v966, 1.0
        %v999 = vadd.f32 %v967, 1.0
        %v1000 = vadd.f32 %v968, 1.0
        %v1001 = vadd.f32 %v969, 1.0
        %v1002 = vadd.f32 %v970, 1.0
        %v1003 = vadd.f32 %v971, 1.0
        %v1004 = vadd.f32 %v972, 1.0
        %v1005 = vadd.f32 %v973, 1.0
        %v1006 = vadd.f32 %v974, 1.0
        %v1007 = vadd.f32 %v975, 1.0
        %v1008 = vadd.f32 %v976, 1.0
        %v1009 = vadd.f32 %v977, 1.0
        %v1010 = vadd.f32 %v978, 1.0
        %v1011 = vadd.f32 %v979, 1.0
        %v1012 = vadd.f32 %v980, 1.0
        %v1013 = vadd.f32 %v981, 1.0
        %v1014 = vadd.f32 %v982, 1.0
        %v1015 = vadd.f32 %v983, 1.0
        %v1016 = vadd.f32 %v984, 1.0
        %v1017 = vadd.f32 %v985, 1.0
        %v1018 = vadd.f32 %v986, 1.0
        %v1019 = vmul.f32 %v987, 0.5
        %v1020 = vmul.f32 %v988, 0.5
        %v1021 = vmul.f32 %v989, 0.5
        %v1022 = vmul.f32 %v990, 0.5
        %v1023 = vmul.f32 %v991, 0.5
        %v1024 = vmul.f32 %v992, 0.5
        %v1025 = vmul.f32 %v993, 0.5
        %v1026 = vmul.f32 %v994, 0.5
        %v1027 = vmul.f32 %v995, 0.5
        %v1028 = vmul.f32 %v996, 0.5
        %v1029 = vmul.f32 %v997, 0.5
        %v1030 = vmul.f32 %v998, 0.5
        %v1031 = vmul.f32 %v999, 0.5
        %v1032 = vmul.f32 %v1000, 0.5
        %v1033 = vmul.f32 %v1001, 0.5
        %v1034 = vmul.f32 %v1002, 0.5
        %v1035 = vmul.f32 %v1003, 0.5
        %v1036 = vmul.f32 %v1004, 0.5
        %v1037 = vmul.f32 %v1005, 0.5
        %v1038 = vmul.f32 %v1006, 0.5
        %v1039 = vmul.f32 %v1007, 0.5
        %v1040 = vmul.f32 %v1008, 0.5
        %v1041 = vmul.f32 %v1009, 0.5
        %v1042 = vmul.f32 %v1010, 0.5
        %v1043 = vmul.f32 %v1011, 0.5
        %v1044 = vmul.f32 %v1012, 0.5
        %v1045 = vmul.f32 %v1013, 0.5
        %v1046 = vmul.f32 %v1014, 0.5
        %v1047 = vmul.f32 %v1015, 0.5
        %v1048 = vmul.f32 %v1016, 0.5
        %v1049 = vmul.f32 %v1017, 0.5
        %v1050 = vmul.f32 %v1018, 0.5
        %v1051 = vld [vmem:[%s5] sm:$0xff]
        %v1052 = vld [vmem:[%s5 + $0x8] sm:$0xff]
        %v1053 = vld [vmem:[%s5 + $0x10] sm:$0xff]
        %v1054 = vld [vmem:[%s5 + $0x18] sm:$0xff]
        %v1055 = vld [vmem:[%s5 + $0x20] sm:$0xff]
        %v1056 = vld [vmem:[%s5 + $0x28] sm:$0xff]
        %v1057 = vld [vmem:[%s5 + $0x30] sm:$0xff]
        %v1058 = vld [vmem:[%s5 + $0x38] sm:$0xff]
        %v1059 = vld [vmem:[%s5 + $0x40] sm:$0xff]
        %v1060 = vld [vmem:[%s5 + $0x48] sm:$0xff]
        %v1061 = vld [vmem:[%s5 + $0x50] sm:$0xff]
        %v1062 = vld [vmem:[%s5 + $0x58] sm:$0xff]
        %v1063 = vld [vmem:[%s5 + $0x60] sm:$0xff]
        %v1064 = vld [vmem:[%s5 + $0x68] sm:$0xff]
        %v1065 = vld [vmem:[%s5 + $0x70] sm:$0xff]
        %v1066 = vld [vmem:[%s5 + $0x78] sm:$0xff]
        %v1067 = vld [vmem:[%s6] sm:$0x1]
        %v1069 = vperm.slane %v1067, 0
        %1071 = vmatpush.msra.mxu0 %v1066
        %1072 = vmatpush.msra.mxu0 %v1065
        %1073 = vmatpush.msra.mxu0 %v1064
        %1074 = vmatpush.msra.mxu0 %v1063
        %1075 = vmatpush.msra.mxu0 %v1062
        %1076 = vmatpush.msra.mxu0 %v1061
        %1077 = vmatpush.msra.mxu0 %v1060
        %1078 = vmatpush.msra.mxu0 %v1059
        %1079 = vmatpush.msra.mxu0 %v1058
        %1080 = vmatpush.msra.mxu0 %v1057
        %1081 = vmatpush.msra.mxu0 %v1056
        %1082 = vmatpush.msra.mxu0 %v1055
        %1083 = vmatpush.msra.mxu0 %v1054
        %1084 = vmatpush.msra.mxu0 %v1053
        %1085 = vmatpush.msra.mxu0 %v1052
        %1086 = vmatpush.msra.mxu0 %v1051
        %1087 = vmatmul.f32.gmra.mxu0 %v1019
        %v1088 = vpop.f32.mrf.mxu0
        %v1089 = vadd.f32 %v1069, %v1088
        %1090 = vmatmul.f32.gmra.mxu0 %v1020
        %v1091 = vpop.f32.mrf.mxu0
        %v1092 = vadd.f32 %v1069, %v1091
        %1093 = vmatmul.f32.gmra.mxu0 %v1021
        %v1094 = vpop.f32.mrf.mxu0
        %v1095 = vadd.f32 %v1069, %v1094
        %1096 = vmatmul.f32.gmra.mxu0 %v1022
        %v1097 = vpop.f32.mrf.mxu0
        %v1098 = vadd.f32 %v1069, %v1097
        %1099 = vmatmul.f32.gmra.mxu0 %v1023
        %v1100 = vpop.f32.mrf.mxu0
        %v1101 = vadd.f32 %v1069, %v1100
        %1102 = vmatmul.f32.gmra.mxu0 %v1024
        %v1103 = vpop.f32.mrf.mxu0
        %v1104 = vadd.f32 %v1069, %v1103
        %1105 = vmatmul.f32.gmra.mxu0 %v1025
        %v1106 = vpop.f32.mrf.mxu0
        %v1107 = vadd.f32 %v1069, %v1106
        %1108 = vmatmul.f32.gmra.mxu0 %v1026
        %v1109 = vpop.f32.mrf.mxu0
        %v1110 = vadd.f32 %v1069, %v1109
        %1111 = vmatmul.f32.gmra.mxu0 %v1027
        %v1112 = vpop.f32.mrf.mxu0
        %v1113 = vadd.f32 %v1069, %v1112
        %1114 = vmatmul.f32.gmra.mxu0 %v1028
        %v1115 = vpop.f32.mrf.mxu0
        %v1116 = vadd.f32 %v1069, %v1115
        %1117 = vmatmul.f32.gmra.mxu0 %v1029
        %v1118 = vpop.f32.mrf.mxu0
        %v1119 = vadd.f32 %v1069, %v1118
        %1120 = vmatmul.f32.gmra.mxu0 %v1030
        %v1121 = vpop.f32.mrf.mxu0
        %v1122 = vadd.f32 %v1069, %v1121
        %1123 = vmatmul.f32.gmra.mxu0 %v1031
        %v1124 = vpop.f32.mrf.mxu0
        %v1125 = vadd.f32 %v1069, %v1124
        %1126 = vmatmul.f32.gmra.mxu0 %v1032
        %v1127 = vpop.f32.mrf.mxu0
        %v1128 = vadd.f32 %v1069, %v1127
        %1129 = vmatmul.f32.gmra.mxu0 %v1033
        %v1130 = vpop.f32.mrf.mxu0
        %v1131 = vadd.f32 %v1069, %v1130
        %1132 = vmatmul.f32.gmra.mxu0 %v1034
        %v1133 = vpop.f32.mrf.mxu0
        %v1134 = vadd.f32 %v1069, %v1133
        %1135 = vmatmul.f32.gmra.mxu0 %v1035
        %v1136 = vpop.f32.mrf.mxu0
        %v1137 = vadd.f32 %v1069, %v1136
        %1138 = vmatmul.f32.gmra.mxu0 %v1036
        %v1139 = vpop.f32.mrf.mxu0
        %v1140 = vadd.f32 %v1069, %v1139
        %1141 = vmatmul.f32.gmra.mxu0 %v1037
        %v1142 = vpop.f32.mrf.mxu0
        %v1143 = vadd.f32 %v1069, %v1142
        %1144 = vmatmul.f32.gmra.mxu0 %v1038
        %v1145 = vpop.f32.mrf.mxu0
        %v1146 = vadd.f32 %v1069, %v1145
        %1147 = vmatmul.f32.gmra.mxu0 %v1039
        %v1148 = vpop.f32.mrf.mxu0
        %v1149 = vadd.f32 %v1069, %v1148
        %1150 = vmatmul.f32.gmra.mxu0 %v1040
        %v1151 = vpop.f32.mrf.mxu0
        %v1152 = vadd.f32 %v1069, %v1151
        %1153 = vmatmul.f32.gmra.mxu0 %v1041
        %v1154 = vpop.f32.mrf.mxu0
        %v1155 = vadd.f32 %v1069, %v1154
        %1156 = vmatmul.f32.gmra.mxu0 %v1042
        %v1157 = vpop.f32.mrf.mxu0
        %v1158 = vadd.f32 %v1069, %v1157
        %1159 = vmatmul.f32.gmra.mxu0 %v1043
        %v1160 = vpop.f32.mrf.mxu0
        %v1161 = vadd.f32 %v1069, %v1160
        %1162 = vmatmul.f32.gmra.mxu0 %v1044
        %v1163 = vpop.f32.mrf.mxu0
        %v1164 = vadd.f32 %v1069, %v1163
        %1165 = vmatmul.f32.gmra.mxu0 %v1045
        %v1166 = vpop.f32.mrf.mxu0
        %v1167 = vadd.f32 %v1069, %v1166
        %1168 = vmatmul.f32.gmra.mxu0 %v1046
        %v1169 = vpop.f32.mrf.mxu0
        %v1170 = vadd.f32 %v1069, %v1169
        %1171 = vmatmul.f32.gmra.mxu0 %v1047
        %v1172 = vpop.f32.mrf.mxu0
        %v1173 = vadd.f32 %v1069, %v1172
        %1174 = vmatmul.f32.gmra.mxu0 %v1048
        %v1175 = vpop.f32.mrf.mxu0
        %v1176 = vadd.f32 %v1069, %v1175
        %1177 = vmatmul.f32.gmra.mxu0 %v1049
        %v1178 = vpop.f32.mrf.mxu0
        %v1179 = vadd.f32 %v1069, %v1178
        %1180 = vmatmul.f32.gmra.mxu0 %v1050
        %v1181 = vpop.f32.mrf.mxu0
        %v1182 = vadd.f32 %v1069, %v1181
        %1183 = vdwg.mxu0
        %v1184 = vmax.f32 %v1089, 0.0
        %v1185 = vmax.f32 %v1092, 0.0
        %v1186 = vmax.f32 %v1095, 0.0
        %v1187 = vmax.f32 %v1098, 0.0
        %v1188 = vmax.f32 %v1101, 0.0
        %v1189 = vmax.f32 %v1104, 0.0
        %v1190 = vmax.f32 %v1107, 0.0
        %v1191 = vmax.f32 %v1110, 0.0
        %v1192 = vmax.f32 %v1113, 0.0
        %v1193 = vmax.f32 %v1116, 0.0
        %v1194 = vmax.f32 %v1119, 0.0
        %v1195 = vmax.f32 %v1122, 0.0
        %v1196 = vmax.f32 %v1125, 0.0
        %v1197 = vmax.f32 %v1128, 0.0
        %v1198 = vmax.f32 %v1131, 0.0
        %v1199 = vmax.f32 %v1134, 0.0
        %v1200 = vmax.f32 %v1137, 0.0
        %v1201 = vmax.f32 %v1140, 0.0
        %v1202 = vmax.f32 %v1143, 0.0
        %v1203 = vmax.f32 %v1146, 0.0
        %v1204 = vmax.f32 %v1149, 0.0
        %v1205 = vmax.f32 %v1152, 0.0
        %v1206 = vmax.f32 %v1155, 0.0
        %v1207 = vmax.f32 %v1158, 0.0
        %v1208 = vmax.f32 %v1161, 0.0
        %v1209 = vmax.f32 %v1164, 0.0
        %v1210 = vmax.f32 %v1167, 0.0
        %v1211 = vmax.f32 %v1170, 0.0
        %v1212 = vmax.f32 %v1173, 0.0
        %v1213 = vmax.f32 %v1176, 0.0
        %v1214 = vmax.f32 %v1179, 0.0
        %v1215 = vmax.f32 %v1182, 0.0
        %v1216 = vld [vmem:[%s7] sm:$0xff]
        %v1217 = vld [vmem:[%s7 + $0x8] sm:$0xff]
        %v1218 = vld [vmem:[%s7 + $0x10] sm:$0xff]
        %v1219 = vld [vmem:[%s7 + $0x18] sm:$0xff]
        %v1220 = vld [vmem:[%s8] sm:$0x1]
        %v1222 = vperm.slane %v1220, 0
        %v1225 = vsel %vm468, %v1184, 0
        %v1228 = vsel %vm468, %v1185, 0
        %v1231 = vsel %vm468, %v1186, 0
        %v1234 = vsel %vm468, %v1187, 0
        %v1237 = vsel %vm468, %v1188, 0
        %v1240 = vsel %vm468, %v1189, 0
        %v1243 = vsel %vm468, %v1190, 0
        %v1246 = vsel %vm468, %v1191, 0
        %v1249 = vsel %vm468, %v1192, 0
        %v1252 = vsel %vm468, %v1193, 0
        %v1255 = vsel %vm468, %v1194, 0
        %v1258 = vsel %vm468, %v1195, 0
        %v1261 = vsel %vm468, %v1196, 0
        %v1264 = vsel %vm468, %v1197, 0
        %v1267 = vsel %vm468, %v1198, 0
        %v1270 = vsel %vm468, %v1199, 0
        %v1273 = vsel %vm468, %v1200, 0
        %v1276 = vsel %vm468, %v1201, 0
        %v1279 = vsel %vm468, %v1202, 0
        %v1282 = vsel %vm468, %v1203, 0
        %v1285 = vsel %vm468, %v1204, 0
        %v1288 = vsel %vm468, %v1205, 0
        %v1291 = vsel %vm468, %v1206, 0
        %v1294 = vsel %vm468, %v1207, 0
        %v1297 = vsel %vm468, %v1208, 0
        %v1300 = vsel %vm468, %v1209, 0
        %v1303 = vsel %vm468, %v1210, 0
        %v1306 = vsel %vm468, %v1211, 0
        %v1309 = vsel %vm468, %v1212, 0
        %v1312 = vsel %vm468, %v1213, 0
        %v1315 = vsel %vm468, %v1214, 0
        %v1318 = vsel %vm468, %v1215, 0
        %1320 = vmatpush.msra.mxu0 0.0
        %1321 = vmatpush.msra.mxu0 0.0
        %1322 = vmatpush.msra.mxu0 0.0
        %1323 = vmatpush.msra.mxu0 0.0
        %1324 = vmatpush.msra.mxu0 0.0
        %1325 = vmatpush.msra.mxu0 0.0
        %1326 = vmatpush.msra.mxu0 0.0
        %1327 = vmatpush.msra.mxu0 0.0
        %1328 = vmatpush.msra.mxu0 0.0
        %1329 = vmatpush.msra.mxu0 0.0
        %1330 = vmatpush.msra.mxu0 0.0
        %1331 = vmatpush.msra.mxu0 0.0
        %1332 = vmatpush.msra.mxu0 %v1219
        %1333 = vmatpush.msra.mxu0 %v1218
        %1334 = vmatpush.msra.mxu0 %v1217
        %1335 = vmatpush.msra.mxu0 %v1216
        %1336 = vmatmul.f32.gmra.mxu0 %v1225
        %v1337 = vpop.f32.mrf.mxu0
        %v1338 = vadd.f32 %v1222, %v1337
        %1339 = vmatmul.f32.gmra.mxu0 %v1228
        %v1340 = vpop.f32.mrf.mxu0
        %v1341 = vadd.f32 %v1222, %v1340
        %1342 = vmatmul.f32.gmra.mxu0 %v1231
        %v1343 = vpop.f32.mrf.mxu0
        %v1344 = vadd.f32 %v1222, %v1343
        %1345 = vmatmul.f32.gmra.mxu0 %v1234
        %v1346 = vpop.f32.mrf.mxu0
        %v1347 = vadd.f32 %v1222, %v1346
        %1348 = vmatmul.f32.gmra.mxu0 %v1237
        %v1349 = vpop.f32.mrf.mxu0
        %v1350 = vadd.f32 %v1222, %v1349
        %1351 = vmatmul.f32.gmra.mxu0 %v1240
        %v1352 = vpop.f32.mrf.mxu0
        %v1353 = vadd.f32 %v1222, %v1352
        %1354 = vmatmul.f32.gmra.mxu0 %v1243
        %v1355 = vpop.f32.mrf.mxu0
        %v1356 = vadd.f32 %v1222, %v1355
        %1357 = vmatmul.f32.gmra.mxu0 %v1246
        %v1358 = vpop.f32.mrf.mxu0
        %v1359 = vadd.f32 %v1222, %v1358
        %1360 = vmatmul.f32.gmra.mxu0 %v1249
        %v1361 = vpop.f32.mrf.mxu0
        %v1362 = vadd.f32 %v1222, %v1361
        %1363 = vmatmul.f32.gmra.mxu0 %v1252
        %v1364 = vpop.f32.mrf.mxu0
        %v1365 = vadd.f32 %v1222, %v1364
        %1366 = vmatmul.f32.gmra.mxu0 %v1255
        %v1367 = vpop.f32.mrf.mxu0
        %v1368 = vadd.f32 %v1222, %v1367
        %1369 = vmatmul.f32.gmra.mxu0 %v1258
        %v1370 = vpop.f32.mrf.mxu0
        %v1371 = vadd.f32 %v1222, %v1370
        %1372 = vmatmul.f32.gmra.mxu0 %v1261
        %v1373 = vpop.f32.mrf.mxu0
        %v1374 = vadd.f32 %v1222, %v1373
        %1375 = vmatmul.f32.gmra.mxu0 %v1264
        %v1376 = vpop.f32.mrf.mxu0
        %v1377 = vadd.f32 %v1222, %v1376
        %1378 = vmatmul.f32.gmra.mxu0 %v1267
        %v1379 = vpop.f32.mrf.mxu0
        %v1380 = vadd.f32 %v1222, %v1379
        %1381 = vmatmul.f32.gmra.mxu0 %v1270
        %v1382 = vpop.f32.mrf.mxu0
        %v1383 = vadd.f32 %v1222, %v1382
        %1384 = vmatmul.f32.gmra.mxu0 %v1273
        %v1385 = vpop.f32.mrf.mxu0
        %v1386 = vadd.f32 %v1222, %v1385
        %1387 = vmatmul.f32.gmra.mxu0 %v1276
        %v1388 = vpop.f32.mrf.mxu0
        %v1389 = vadd.f32 %v1222, %v1388
        %1390 = vmatmul.f32.gmra.mxu0 %v1279
        %v1391 = vpop.f32.mrf.mxu0
        %v1392 = vadd.f32 %v1222, %v1391
        %1393 = vmatmul.f32.gmra.mxu0 %v1282
        %v1394 = vpop.f32.mrf.mxu0
        %v1395 = vadd.f32 %v1222, %v1394
        %1396 = vmatmul.f32.gmra.mxu0 %v1285
        %v1397 = vpop.f32.mrf.mxu0
        %v1398 = vadd.f32 %v1222, %v1397
        %1399 = vmatmul.f32.gmra.mxu0 %v1288
        %v1400 = vpop.f32.mrf.mxu0
        %v1401 = vadd.f32 %v1222, %v1400
        %1402 = vmatmul.f32.gmra.mxu0 %v1291
        %v1403 = vpop.f32.mrf.mxu0
        %v1404 = vadd.f32 %v1222, %v1403
        %1405 = vmatmul.f32.gmra.mxu0 %v1294
        %v1406 = vpop.f32.mrf.mxu0
        %v1407 = vadd.f32 %v1222, %v1406
        %1408 = vmatmul.f32.gmra.mxu0 %v1297
        %v1409 = vpop.f32.mrf.mxu0
        %v1410 = vadd.f32 %v1222, %v1409
        %1411 = vmatmul.f32.gmra.mxu0 %v1300
        %v1412 = vpop.f32.mrf.mxu0
        %v1413 = vadd.f32 %v1222, %v1412
        %1414 = vmatmul.f32.gmra.mxu0 %v1303
        %v1415 = vpop.f32.mrf.mxu0
        %v1416 = vadd.f32 %v1222, %v1415
        %1417 = vmatmul.f32.gmra.mxu0 %v1306
        %v1418 = vpop.f32.mrf.mxu0
        %v1419 = vadd.f32 %v1222, %v1418
        %1420 = vmatmul.f32.gmra.mxu0 %v1309
        %v1421 = vpop.f32.mrf.mxu0
        %v1422 = vadd.f32 %v1222, %v1421
        %1423 = vmatmul.f32.gmra.mxu0 %v1312
        %v1424 = vpop.f32.mrf.mxu0
        %v1425 = vadd.f32 %v1222, %v1424
        %1426 = vmatmul.f32.gmra.mxu0 %v1315
        %v1427 = vpop.f32.mrf.mxu0
        %v1428 = vadd.f32 %v1222, %v1427
        %1429 = vmatmul.f32.gmra.mxu0 %v1318
        %v1430 = vpop.f32.mrf.mxu0
        %v1431 = vadd.f32 %v1222, %v1430
        %1432 = vdwg.mxu0
        %vm1433 = vcmask 64512
        %1434 = vst.msk [vmem:[%s362] sm:$0xff] %vm1433, %v1338
        %1435 = vst.msk [vmem:[%s362 + $0x8] sm:$0xff] %vm1433, %v1341
        %1436 = vst.msk [vmem:[%s362 + $0x10] sm:$0xff] %vm1433, %v1344
        %1437 = vst.msk [vmem:[%s362 + $0x18] sm:$0xff] %vm1433, %v1347
        %1438 = vst.msk [vmem:[%s362 + $0x20] sm:$0xff] %vm1433, %v1350
        %1439 = vst.msk [vmem:[%s362 + $0x28] sm:$0xff] %vm1433, %v1353
        %1440 = vst.msk [vmem:[%s362 + $0x30] sm:$0xff] %vm1433, %v1356
        %1441 = vst.msk [vmem:[%s362 + $0x38] sm:$0xff] %vm1433, %v1359
        %1442 = vst.msk [vmem:[%s362 + $0x40] sm:$0xff] %vm1433, %v1362
        %1443 = vst.msk [vmem:[%s362 + $0x48] sm:$0xff] %vm1433, %v1365
        %1444 = vst.msk [vmem:[%s362 + $0x50] sm:$0xff] %vm1433, %v1368
        %1445 = vst.msk [vmem:[%s362 + $0x58] sm:$0xff] %vm1433, %v1371
        %1446 = vst.msk [vmem:[%s362 + $0x60] sm:$0xff] %vm1433, %v1374
        %1447 = vst.msk [vmem:[%s362 + $0x68] sm:$0xff] %vm1433, %v1377
        %1448 = vst.msk [vmem:[%s362 + $0x70] sm:$0xff] %vm1433, %v1380
        %1449 = vst.msk [vmem:[%s362 + $0x78] sm:$0xff] %vm1433, %v1383
        %1450 = vst.msk [vmem:[%s362 + $0x80] sm:$0xff] %vm1433, %v1386
        %1451 = vst.msk [vmem:[%s362 + $0x88] sm:$0xff] %vm1433, %v1389
        %1452 = vst.msk [vmem:[%s362 + $0x90] sm:$0xff] %vm1433, %v1392
        %1453 = vst.msk [vmem:[%s362 + $0x98] sm:$0xff] %vm1433, %v1395
        %1454 = vst.msk [vmem:[%s362 + $0xa0] sm:$0xff] %vm1433, %v1398
        %1455 = vst.msk [vmem:[%s362 + $0xa8] sm:$0xff] %vm1433, %v1401
        %1456 = vst.msk [vmem:[%s362 + $0xb0] sm:$0xff] %vm1433, %v1404
        %1457 = vst.msk [vmem:[%s362 + $0xb8] sm:$0xff] %vm1433, %v1407
        %1458 = vst.msk [vmem:[%s362 + $0xc0] sm:$0xff] %vm1433, %v1410
        %1459 = vst.msk [vmem:[%s362 + $0xc8] sm:$0xff] %vm1433, %v1413
        %1460 = vst.msk [vmem:[%s362 + $0xd0] sm:$0xff] %vm1433, %v1416
        %1461 = vst.msk [vmem:[%s362 + $0xd8] sm:$0xff] %vm1433, %v1419
        %1462 = vst.msk [vmem:[%s362 + $0xe0] sm:$0xff] %vm1433, %v1422
        %1463 = vst.msk [vmem:[%s362 + $0xe8] sm:$0xff] %vm1433, %v1425
        %1464 = vst.msk [vmem:[%s362 + $0xf0] sm:$0xff] %vm1433, %v1428
        %1465 = vst.msk [vmem:[%s362 + $0xf8] sm:$0xff] %vm1433, %v1431
        %s1466 = sand.u32 %s227, 1
        %s1467 = sand.u32 %s227, 1
        %s1468 = smul.addr %s1467, 256
        %s1469 = scalar_lea.vmem [#allocation2], %s1468
        // Predicated region
        $region57: #{affinity_merge_forward.1} parent=55 // pred_check
          %p1470 = pneg %p237
        $region58: #{affinity_merge_forward.1} parent=55 // pred_check_branch
          %1472 = sbr.rel (%p1470) target = $region60
        $region59: #{affinity_merge_forward.1} parent=55 // pred_region
          %s1473 = smul.u32 32, %s20
          %s1474 = ssub.s32 63, %s1473
          %p1475 = scmp.lt.s32.totalorder %s1474, 32
          %s1476 = scalar_select %p1475, %s1474, 32
          %s1477 = smul.u32 8, %s1476
          %p1478 = scmp.ne.s32.totalorder 0, %s1477
          %s1479 = smul.addr %s1473, 8
          %s1480 = scalar_lea.vmem %s9, %s1479
          // Predicated region
          $region61: #{affinity_merge_forward.1} parent=59 // pred_check
            %p1481 = pneg %p1478
          $region62: #{affinity_merge_forward.1} parent=59 // pred_check_branch
            %1483 = sbr.rel (%p1481) target = $region64
          $region63: #{affinity_merge_forward.1} parent=59 // pred_region
            // Predicated region
            $region65: #{affinity_merge_forward.1} parent=63 // pred_check
              _
            $region66: #{affinity_merge_forward.1} parent=63 // pred_check_branch
              %1485 = sbr.rel (0) target = $region68
            $region67: #{affinity_merge_forward.1} parent=63 // pred_region
              // Predicated region
              $region87: #{affinity_merge_forward.1} parent=67 // pred_check
                _
              $region88: #{affinity_merge_forward.1} parent=67 // pred_check_branch
                %1597 = sbr.rel (0) target = $region90
              $region89: #{affinity_merge_forward.1} parent=67 // pred_region
                %s1598 = sshrl.u32 %s1476, 5
                // While loop
                $region91: #{affinity_merge_forward.1} parent=89 // loop_pre_header
                  _
                $region92: #{affinity_merge_forward.1} parent=89 // loop_header
                  %s1600 = sphi 0, %s1602
                  %p1601 = scmp.ge.s32.totalorder %s1600, %s1598
                  %s1605 = sphi 0, %s1674
                  %s1606 = sphi %s1469, %s1677
                  %s1607 = sphi %s1480, %s1678
                $region93: #{affinity_merge_forward.1} parent=89 // loop_header_branch
                  %1604 = sbr.rel (%p1601) target = $region97
                $region94: #{affinity_merge_forward.1} parent=89 // loop_body
                  %v1608 = vld [vmem:[%s1606] sm:$0xff]
                  %1609 = vst [vmem:[%s1607] sm:$0xff] %v1608
                  %v1610 = vld [vmem:[%s1606 + $0x8] sm:$0xff]
                  %1611 = vst [vmem:[%s1607 + $0x8] sm:$0xff] %v1610
                  %v1612 = vld [vmem:[%s1606 + $0x10] sm:$0xff]
                  %1613 = vst [vmem:[%s1607 + $0x10] sm:$0xff] %v1612
                  %v1614 = vld [vmem:[%s1606 + $0x18] sm:$0xff]
                  %1615 = vst [vmem:[%s1607 + $0x18] sm:$0xff] %v1614
                  %v1616 = vld [vmem:[%s1606 + $0x20] sm:$0xff]
                  %1617 = vst [vmem:[%s1607 + $0x20] sm:$0xff] %v1616
                  %v1618 = vld [vmem:[%s1606 + $0x28] sm:$0xff]
                  %1619 = vst [vmem:[%s1607 + $0x28] sm:$0xff] %v1618
                  %v1620 = vld [vmem:[%s1606 + $0x30] sm:$0xff]
                  %1621 = vst [vmem:[%s1607 + $0x30] sm:$0xff] %v1620
                  %v1622 = vld [vmem:[%s1606 + $0x38] sm:$0xff]
                  %1623 = vst [vmem:[%s1607 + $0x38] sm:$0xff] %v1622
                  %v1624 = vld [vmem:[%s1606 + $0x40] sm:$0xff]
                  %1625 = vst [vmem:[%s1607 + $0x40] sm:$0xff] %v1624
                  %v1626 = vld [vmem:[%s1606 + $0x48] sm:$0xff]
                  %1627 = vst [vmem:[%s1607 + $0x48] sm:$0xff] %v1626
                  %v1628 = vld [vmem:[%s1606 + $0x50] sm:$0xff]
                  %1629 = vst [vmem:[%s1607 + $0x50] sm:$0xff] %v1628
                  %v1630 = vld [vmem:[%s1606 + $0x58] sm:$0xff]
                  %1631 = vst [vmem:[%s1607 + $0x58] sm:$0xff] %v1630
                  %v1632 = vld [vmem:[%s1606 + $0x60] sm:$0xff]
                  %1633 = vst [vmem:[%s1607 + $0x60] sm:$0xff] %v1632
                  %v1634 = vld [vmem:[%s1606 + $0x68] sm:$0xff]
                  %1635 = vst [vmem:[%s1607 + $0x68] sm:$0xff] %v1634
                  %v1636 = vld [vmem:[%s1606 + $0x70] sm:$0xff]
                  %1637 = vst [vmem:[%s1607 + $0x70] sm:$0xff] %v1636
                  %v1638 = vld [vmem:[%s1606 + $0x78] sm:$0xff]
                  %1639 = vst [vmem:[%s1607 + $0x78] sm:$0xff] %v1638
                  %v1640 = vld [vmem:[%s1606 + $0x80] sm:$0xff]
                  %1641 = vst [vmem:[%s1607 + $0x80] sm:$0xff] %v1640
                  %v1642 = vld [vmem:[%s1606 + $0x88] sm:$0xff]
                  %1643 = vst [vmem:[%s1607 + $0x88] sm:$0xff] %v1642
                  %v1644 = vld [vmem:[%s1606 + $0x90] sm:$0xff]
                  %1645 = vst [vmem:[%s1607 + $0x90] sm:$0xff] %v1644
                  %v1646 = vld [vmem:[%s1606 + $0x98] sm:$0xff]
                  %1647 = vst [vmem:[%s1607 + $0x98] sm:$0xff] %v1646
                  %v1648 = vld [vmem:[%s1606 + $0xa0] sm:$0xff]
                  %1649 = vst [vmem:[%s1607 + $0xa0] sm:$0xff] %v1648
                  %v1650 = vld [vmem:[%s1606 + $0xa8] sm:$0xff]
                  %1651 = vst [vmem:[%s1607 + $0xa8] sm:$0xff] %v1650
                  %v1652 = vld [vmem:[%s1606 + $0xb0] sm:$0xff]
                  %1653 = vst [vmem:[%s1607 + $0xb0] sm:$0xff] %v1652
                  %v1654 = vld [vmem:[%s1606 + $0xb8] sm:$0xff]
                  %1655 = vst [vmem:[%s1607 + $0xb8] sm:$0xff] %v1654
                  %v1656 = vld [vmem:[%s1606 + $0xc0] sm:$0xff]
                  %1657 = vst [vmem:[%s1607 + $0xc0] sm:$0xff] %v1656
                  %v1658 = vld [vmem:[%s1606 + $0xc8] sm:$0xff]
                  %1659 = vst [vmem:[%s1607 + $0xc8] sm:$0xff] %v1658
                  %v1660 = vld [vmem:[%s1606 + $0xd0] sm:$0xff]
                  %1661 = vst [vmem:[%s1607 + $0xd0] sm:$0xff] %v1660
                  %v1662 = vld [vmem:[%s1606 + $0xd8] sm:$0xff]
                  %1663 = vst [vmem:[%s1607 + $0xd8] sm:$0xff] %v1662
                  %v1664 = vld [vmem:[%s1606 + $0xe0] sm:$0xff]
                  %1665 = vst [vmem:[%s1607 + $0xe0] sm:$0xff] %v1664
                  %v1666 = vld [vmem:[%s1606 + $0xe8] sm:$0xff]
                  %1667 = vst [vmem:[%s1607 + $0xe8] sm:$0xff] %v1666
                  %v1668 = vld [vmem:[%s1606 + $0xf0] sm:$0xff]
                  %1669 = vst [vmem:[%s1607 + $0xf0] sm:$0xff] %v1668
                  %v1670 = vld [vmem:[%s1606 + $0xf8] sm:$0xff]
                  %1671 = vst [vmem:[%s1607 + $0xf8] sm:$0xff] %v1670
                  %s1672 = sadd.s32 1, %s1605
                  %p1673 = scmp.ge.s32.totalorder %s1672, %s1598
                  %s1674 = scalar_select %p1673, 0, %s1672
                  %s1675 = smul.u32 %s1674, 256
                  %s1676 = smul.u32 %s1674, 256
                  %s1677 = scalar_lea.vmem %s1469, %s1675 [#allocation2]
                  %s1678 = scalar_lea.vmem %s1480, %s1676
                $region95: #{affinity_merge_forward.1} parent=89 // loop_footer
                  %s1602 = sadd.s32 %s1600, 1
                $region96: #{affinity_merge_forward.1} parent=89 // loop_footer_branch
                  %1599 = sbr.rel target = $region92
                $region97: #{affinity_merge_forward.1} parent=89 // loop_exit
                  _
                %s1679 = sshrl.u32 %s1476, 5
                %s1680 = sand.u32 %s1476, 31
                %s1681 = smul.u32 %s1679, 32
                %s1682 = smul.u32 8, %s1681
                %s1683 = scalar_lea.vmem %s1469, %s1682 [#allocation2]
                %s1684 = smul.u32 8, %s1681
                %s1685 = scalar_lea.vmem %s1480, %s1684
                // While loop
                $region98: #{affinity_merge_forward.1} parent=89 // loop_pre_header
                  _
                $region99: #{affinity_merge_forward.1} parent=89 // loop_header
                  %s1687 = sphi 0, %s1689
                  %p1688 = scmp.ge.s32.totalorder %s1687, %s1680
                  %s1692 = sphi 0, %s1699
                  %s1693 = sphi %s1683, %s1702
                  %s1694 = sphi %s1685, %s1703
                $region100: #{affinity_merge_forward.1} parent=89 // loop_header_branch
                  %1691 = sbr.rel (%p1688) target = $region104
                $region101: #{affinity_merge_forward.1} parent=89 // loop_body
                  %v1695 = vld [vmem:[%s1693] sm:$0xff]
                  %1696 = vst [vmem:[%s1694] sm:$0xff] %v1695
                  %s1697 = sadd.s32 1, %s1692
                  %p1698 = scmp.ge.s32.totalorder %s1697, %s1680
                  %s1699 = scalar_select %p1698, 0, %s1697
                  %s1700 = smul.u32 %s1699, 8
                  %s1701 = smul.u32 %s1699, 8
                  %s1702 = scalar_lea.vmem %s1683, %s1700 [#allocation2]
                  %s1703 = scalar_lea.vmem %s1685, %s1701
                $region102: #{affinity_merge_forward.1} parent=89 // loop_footer
                  %s1689 = sadd.s32 %s1687, 1
                $region103: #{affinity_merge_forward.1} parent=89 // loop_footer_branch
                  %1686 = sbr.rel target = $region99
                $region104: #{affinity_merge_forward.1} parent=89 // loop_exit
                  _
              $region90: #{affinity_merge_forward.1} parent=67 // pred_fallthru
                _
              // Predicated region
              $region105: #{affinity_merge_forward.1} parent=67 // pred_check
                _
              $region106: #{affinity_merge_forward.1} parent=67 // pred_check_branch
                %1705 = sbr.rel target = $region108
              $region107: #{affinity_merge_forward.1} parent=67 // pred_region
                _
              $region108: #{affinity_merge_forward.1} parent=67 // pred_fallthru
                _
            $region68: #{affinity_merge_forward.1} parent=63 // pred_fallthru
              _
            // Predicated region
            $region69: #{affinity_merge_forward.1} parent=63 // pred_check
              _
            $region70: #{affinity_merge_forward.1} parent=63 // pred_check_branch
              %1487 = sbr.rel target = $region72
            $region71: #{affinity_merge_forward.1} parent=63 // pred_region
              %s1489 = ssub.s32 256, 1
              %s1490 = sshrl.u32 %s1476, 5
              // While loop
              $region73: #{affinity_merge_forward.1} parent=71 // loop_pre_header
                _
              $region74: #{affinity_merge_forward.1} parent=71 // loop_header
                %s1492 = sphi 0, %s1494
                %p1493 = scmp.ge.s32.totalorder %s1492, %s1490
                %s1497 = sphi 0, %s1566
                %s1498 = sphi %s1469, %s1569
                %s1499 = sphi %s1480, %s1570
              $region75: #{affinity_merge_forward.1} parent=71 // loop_header_branch
                %1496 = sbr.rel (%p1493) target = $region79
              $region76: #{affinity_merge_forward.1} parent=71 // loop_body
                %v1500 = vld [vmem:[%s1498] sm:%s1489]
                %1501 = vst [vmem:[%s1499] sm:%s1489] %v1500
                %v1502 = vld [vmem:[%s1498 + $0x8] sm:%s1489]
                %1503 = vst [vmem:[%s1499 + $0x8] sm:%s1489] %v1502
                %v1504 = vld [vmem:[%s1498 + $0x10] sm:%s1489]
                %1505 = vst [vmem:[%s1499 + $0x10] sm:%s1489] %v1504
                %v1506 = vld [vmem:[%s1498 + $0x18] sm:%s1489]
                %1507 = vst [vmem:[%s1499 + $0x18] sm:%s1489] %v1506
                %v1508 = vld [vmem:[%s1498 + $0x20] sm:%s1489]
                %1509 = vst [vmem:[%s1499 + $0x20] sm:%s1489] %v1508
                %v1510 = vld [vmem:[%s1498 + $0x28] sm:%s1489]
                %1511 = vst [vmem:[%s1499 + $0x28] sm:%s1489] %v1510
                %v1512 = vld [vmem:[%s1498 + $0x30] sm:%s1489]
                %1513 = vst [vmem:[%s1499 + $0x30] sm:%s1489] %v1512
                %v1514 = vld [vmem:[%s1498 + $0x38] sm:%s1489]
                %1515 = vst [vmem:[%s1499 + $0x38] sm:%s1489] %v1514
                %v1516 = vld [vmem:[%s1498 + $0x40] sm:%s1489]
                %1517 = vst [vmem:[%s1499 + $0x40] sm:%s1489] %v1516
                %v1518 = vld [vmem:[%s1498 + $0x48] sm:%s1489]
                %1519 = vst [vmem:[%s1499 + $0x48] sm:%s1489] %v1518
                %v1520 = vld [vmem:[%s1498 + $0x50] sm:%s1489]
                %1521 = vst [vmem:[%s1499 + $0x50] sm:%s1489] %v1520
                %v1522 = vld [vmem:[%s1498 + $0x58] sm:%s1489]
                %1523 = vst [vmem:[%s1499 + $0x58] sm:%s1489] %v1522
                %v1524 = vld [vmem:[%s1498 + $0x60] sm:%s1489]
                %1525 = vst [vmem:[%s1499 + $0x60] sm:%s1489] %v1524
                %v1526 = vld [vmem:[%s1498 + $0x68] sm:%s1489]
                %1527 = vst [vmem:[%s1499 + $0x68] sm:%s1489] %v1526
                %v1528 = vld [vmem:[%s1498 + $0x70] sm:%s1489]
                %1529 = vst [vmem:[%s1499 + $0x70] sm:%s1489] %v1528
                %v1530 = vld [vmem:[%s1498 + $0x78] sm:%s1489]
                %1531 = vst [vmem:[%s1499 + $0x78] sm:%s1489] %v1530
                %v1532 = vld [vmem:[%s1498 + $0x80] sm:%s1489]
                %1533 = vst [vmem:[%s1499 + $0x80] sm:%s1489] %v1532
                %v1534 = vld [vmem:[%s1498 + $0x88] sm:%s1489]
                %1535 = vst [vmem:[%s1499 + $0x88] sm:%s1489] %v1534
                %v1536 = vld [vmem:[%s1498 + $0x90] sm:%s1489]
                %1537 = vst [vmem:[%s1499 + $0x90] sm:%s1489] %v1536
                %v1538 = vld [vmem:[%s1498 + $0x98] sm:%s1489]
                %1539 = vst [vmem:[%s1499 + $0x98] sm:%s1489] %v1538
                %v1540 = vld [vmem:[%s1498 + $0xa0] sm:%s1489]
                %1541 = vst [vmem:[%s1499 + $0xa0] sm:%s1489] %v1540
                %v1542 = vld [vmem:[%s1498 + $0xa8] sm:%s1489]
                %1543 = vst [vmem:[%s1499 + $0xa8] sm:%s1489] %v1542
                %v1544 = vld [vmem:[%s1498 + $0xb0] sm:%s1489]
                %1545 = vst [vmem:[%s1499 + $0xb0] sm:%s1489] %v1544
                %v1546 = vld [vmem:[%s1498 + $0xb8] sm:%s1489]
                %1547 = vst [vmem:[%s1499 + $0xb8] sm:%s1489] %v1546
                %v1548 = vld [vmem:[%s1498 + $0xc0] sm:%s1489]
                %1549 = vst [vmem:[%s1499 + $0xc0] sm:%s1489] %v1548
                %v1550 = vld [vmem:[%s1498 + $0xc8] sm:%s1489]
                %1551 = vst [vmem:[%s1499 + $0xc8] sm:%s1489] %v1550
                %v1552 = vld [vmem:[%s1498 + $0xd0] sm:%s1489]
                %1553 = vst [vmem:[%s1499 + $0xd0] sm:%s1489] %v1552
                %v1554 = vld [vmem:[%s1498 + $0xd8] sm:%s1489]
                %1555 = vst [vmem:[%s1499 + $0xd8] sm:%s1489] %v1554
                %v1556 = vld [vmem:[%s1498 + $0xe0] sm:%s1489]
                %1557 = vst [vmem:[%s1499 + $0xe0] sm:%s1489] %v1556
                %v1558 = vld [vmem:[%s1498 + $0xe8] sm:%s1489]
                %1559 = vst [vmem:[%s1499 + $0xe8] sm:%s1489] %v1558
                %v1560 = vld [vmem:[%s1498 + $0xf0] sm:%s1489]
                %1561 = vst [vmem:[%s1499 + $0xf0] sm:%s1489] %v1560
                %v1562 = vld [vmem:[%s1498 + $0xf8] sm:%s1489]
                %1563 = vst [vmem:[%s1499 + $0xf8] sm:%s1489] %v1562
                %s1564 = sadd.s32 1, %s1497
                %p1565 = scmp.ge.s32.totalorder %s1564, %s1490
                %s1566 = scalar_select %p1565, 0, %s1564
                %s1567 = smul.u32 %s1566, 256
                %s1568 = smul.u32 %s1566, 256
                %s1569 = scalar_lea.vmem %s1469, %s1567 [#allocation2]
                %s1570 = scalar_lea.vmem %s1480, %s1568
              $region77: #{affinity_merge_forward.1} parent=71 // loop_footer
                %s1494 = sadd.s32 %s1492, 1
              $region78: #{affinity_merge_forward.1} parent=71 // loop_footer_branch
                %1491 = sbr.rel target = $region74
              $region79: #{affinity_merge_forward.1} parent=71 // loop_exit
                _
              %s1571 = sshrl.u32 %s1476, 5
              %s1572 = sand.u32 %s1476, 31
              %s1573 = smul.u32 %s1571, 32
              %s1574 = smul.u32 8, %s1573
              %s1575 = scalar_lea.vmem %s1469, %s1574 [#allocation2]
              %s1576 = smul.u32 8, %s1573
              %s1577 = scalar_lea.vmem %s1480, %s1576
              // While loop
              $region80: #{affinity_merge_forward.1} parent=71 // loop_pre_header
                _
              $region81: #{affinity_merge_forward.1} parent=71 // loop_header
                %s1579 = sphi 0, %s1581
                %p1580 = scmp.ge.s32.totalorder %s1579, %s1572
                %s1584 = sphi 0, %s1591
                %s1585 = sphi %s1575, %s1594
                %s1586 = sphi %s1577, %s1595
              $region82: #{affinity_merge_forward.1} parent=71 // loop_header_branch
                %1583 = sbr.rel (%p1580) target = $region86
              $region83: #{affinity_merge_forward.1} parent=71 // loop_body
                %v1587 = vld [vmem:[%s1585] sm:%s1489]
                %1588 = vst [vmem:[%s1586] sm:%s1489] %v1587
                %s1589 = sadd.s32 1, %s1584
                %p1590 = scmp.ge.s32.totalorder %s1589, %s1572
                %s1591 = scalar_select %p1590, 0, %s1589
                %s1592 = smul.u32 %s1591, 8
                %s1593 = smul.u32 %s1591, 8
                %s1594 = scalar_lea.vmem %s1575, %s1592 [#allocation2]
                %s1595 = scalar_lea.vmem %s1577, %s1593
              $region84: #{affinity_merge_forward.1} parent=71 // loop_footer
                %s1581 = sadd.s32 %s1579, 1
              $region85: #{affinity_merge_forward.1} parent=71 // loop_footer_branch
                %1578 = sbr.rel target = $region81
              $region86: #{affinity_merge_forward.1} parent=71 // loop_exit
                _
            $region72: #{affinity_merge_forward.1} parent=63 // pred_fallthru
              _
          $region64: #{affinity_merge_forward.1} parent=59 // pred_fallthru
            _
          %1706 = vnop
        $region60: #{affinity_merge_forward.1} parent=55 // pred_fallthru
          _
      $region56: #{affinity_merge_forward.1} parent=5 // pred_fallthru
        _
      %p1707 = scmp.le.s32.totalorder 2, %s15
      // Predicated region
      $region109: #{affinity_merge_forward.1} parent=5 // pred_check
        %p1708 = pneg %p1707
      $region110: #{affinity_merge_forward.1} parent=5 // pred_check_branch
        %1710 = sbr.rel (%p1708) target = $region112
      $region111: #{affinity_merge_forward.1} parent=5 // pred_region
        %s1711 = ssub.s32 %s15, 2
        // Predicated region
        $region113: #{affinity_merge_forward.1} parent=111 // pred_check
          %p1712 = pneg %p243
        $region114: #{affinity_merge_forward.1} parent=111 // pred_check_branch
          %1714 = sbr.rel (%p1712) target = $region116
        $region115: #{affinity_merge_forward.1} parent=111 // pred_region
          %s1715 = sand.u32 %s228, 1
          %s1716 = sand.u32 %s228, 1
          %s1717 = smul.addr %s1716, 256
          %s1718 = scalar_lea.vmem [#allocation2], %s1717
        $region116: #{affinity_merge_forward.1} parent=111 // pred_fallthru
          _
      $region112: #{affinity_merge_forward.1} parent=5 // pred_fallthru
        _
    $region6: #{affinity_merge_forward.1} parent=1 // loop_footer
      %s19 = sadd.s32 1, %s15
    $region7: #{affinity_merge_forward.1} parent=1 // loop_footer_branch
      %14 = sbr.rel target = $region3
    $region8: #{affinity_merge_forward.1} parent=1 // loop_exit
      _

</llo_original>
